<compile_context>
chip_gen: v7x
topology: tpu7x:2x2x1
jax: 0.10.0
libtpu: 0.0.40
codegen_flags: <defaults>
</compile_context>

<pallas_src>
import functools

import jax
import jax.numpy as jnp
from jax.experimental import pallas as pl
from jax.experimental.pallas import tpu as pltpu


# ----------------------------- fold matrix ----------------------------------

def build_fold_matrix(chunk, hop, n_chunks, n_frames):
    """0/1 matrix M of shape (chunk*n_chunks, n_frames) such that
    fold(blocks) == blocks_2d @ M, where blocks_2d is (C, chunk*n_chunks) with
    column index c*n_chunks + j.  Matches
    F.fold(out=(n_frames,1), kernel=(chunk,1), padding=(chunk,0), stride=(hop,1)):
        folded[t] = sum_{c,j : j*hop + c == t + chunk} blocks[c, j]
    """
    c = jnp.arange(chunk)[:, None, None]
    j = jnp.arange(n_chunks)[None, :, None]
    t = jnp.arange(n_frames)[None, None, :]
    m = (j * hop + c == t + chunk).astype(jnp.float32)
    return m.reshape(chunk * n_chunks, n_frames)


# ----------------------------- fused decoder kernel -------------------------

def _decoder_kernel(sel_ref,                       # scalar-prefetch (SMEM), used by index maps
                    x_ref, mix_ref, mfold_ref, cs_ref, a_ref,
                    wf_ref, bf_ref, wo_ref, bo_ref, wg_ref, bg_ref,
                    wm_ref, wdT_ref,
                    o_ref, fw_ref, *, P, bn, ft):
    """One grid step = one example x one frame tile, SELECTED decoder only.

    x_ref   : (1, bn, S)      LSTM output (bf16), S = chunk*n_chunks
    mix_ref : (1, ic, ft)     encoder output (f32)
    mfold   : (S, ft)         0/1 fold matrix (bf16)
    cs_ref  : (1, ft)         fold column coverage (f32) -- bias scaling
    wf_ref  : (1, P*bn, bn)   first_out conv weight, zero padded to P sources (bf16)
    o_ref   : (1, P, K, ft)   decoder-filter frames (pre overlap-add, f32)
    fw_ref  : (bn, P*ft)      VMEM scratch: folded activations, sources along lanes
    """
    del sel_ref  # decoder selection is applied in the BlockSpec index maps

    # PReLU in f32 (v5e has no bf16 VPU), then fold BEFORE the bn -> P*bn conv.
    a = a_ref[0, 0, 0]
    x = x_ref[0].astype(jnp.float32)                              # (bn, S)
    xp = jnp.where(x >= 0, x, a * x)
    xf = jnp.dot(xp.astype(jnp.bfloat16), mfold_ref[...],
                 preferred_element_type=jnp.float32)              # (bn, ft)
    xf_b = xf.astype(jnp.bfloat16)

    # bn -> P*bn conv; since fold was applied first, the bias scales with the
    # fold coverage:  folded = Wf @ (x @ M) + bf * colsum(M).
    # Results are stored side-by-side along lanes -> (bn, P*ft) for wide Stage 2.
    wf = wf_ref[0]                                                # (P*bn, bn) bf16
    bf = bf_ref[0]                                                # (P*bn, 1)  f32
    cs = cs_ref[...]                                              # (1, ft)    f32
    for s in range(P):
        fs = jnp.dot(wf[s * bn:(s + 1) * bn, :], xf_b,
                     preferred_element_type=jnp.float32)          # (bn, ft)
        fw_ref[:, s * ft:(s + 1) * ft] = (
            fs + bf[s * bn:(s + 1) * bn, :] * cs).astype(jnp.bfloat16)

    # Stage 2: one wide matmul per weight over all P sources (N = P*ft).
    fw = fw_ref[...]                                              # (bn, P*ft) bf16
    out_lin = jnp.dot(wo_ref[0], fw, preferred_element_type=jnp.float32) + bo_ref[0]
    gate_lin = jnp.dot(wg_ref[0], fw, preferred_element_type=jnp.float32) + bg_ref[0]
    # sigmoid(x) = 0.5*(1 + tanh(x/2)): one EUP push instead of exp + divide.
    gated = jnp.tanh(out_lin) * (0.5 * (1.0 + jnp.tanh(0.5 * gate_lin)))
    mask = jnp.maximum(
        jnp.dot(wm_ref[0], gated.astype(jnp.bfloat16),
                preferred_element_type=jnp.float32), 0.0)         # (ic, P*ft) relu mask

    mix = mix_ref[0]                                              # (ic, ft) f32
    wdT = wdT_ref[0]                                              # (K, ic)  bf16
    for s in range(P):
        src = (mask[:, s * ft:(s + 1) * ft] * mix).astype(jnp.bfloat16)
        o_ref[0, s, :, :] = jnp.dot(wdT, src, preferred_element_type=jnp.float32)


def _pick_frame_tile(F, max_tile=512):
    """Largest multiple-of-128 divisor of F (<= max_tile): lane-dense blocks with
    bounded per-step VMEM, independent of the total frame count."""
    best = None
    t = 128
    while t <= min(F, max_tile):
        if F % t == 0:
            best = t
        t += 128
    if best is None:
        # TODO(synk): frame counts not divisible by 128 fall back to one full-F tile.
        best = F
    return best


def run_selected_decoders(sel, x3b, mix_e, mfoldb, colsum, a_all,
                          Wf, bf, Wo, bo, Wg, bg, Wm, WdT, *, n_frames, f_tile):
    E, bn, S = x3b.shape
    nd, PB, bn2 = Wf.shape
    assert bn2 == bn
    P = PB // bn
    ic = Wm.shape[1]
    K = WdT.shape[1]
    F = n_frames
    assert F % f_tile == 0
    n_ft = F // f_tile

    kernel = functools.partial(_decoder_kernel, P=P, bn=bn, ft=f_tile)

    grid_spec = pltpu.PrefetchScalarGridSpec(
        num_scalar_prefetch=1,                       # decoder_selected -> SMEM
        grid=(E, n_ft),
        in_specs=[
            pl.BlockSpec((1, bn, S), lambda e, t, sel: (e, 0, 0)),        # x (bf16)
            pl.BlockSpec((1, ic, f_tile), lambda e, t, sel: (e, 0, t)),   # mixture (f32)
            pl.BlockSpec((S, f_tile), lambda e, t, sel: (0, t)),          # fold matrix (bf16)
            pl.BlockSpec((1, f_tile), lambda e, t, sel: (0, t)),          # fold colsum (f32)
            pl.BlockSpec((1, 1, 1), lambda e, t, sel: (sel[e], 0, 0)),    # prelu alpha
            pl.BlockSpec((1, PB, bn), lambda e, t, sel: (sel[e], 0, 0)),  # W_first (padded)
            pl.BlockSpec((1, PB, 1), lambda e, t, sel: (sel[e], 0, 0)),   # b_first (padded)
            pl.BlockSpec((1, bn, bn), lambda e, t, sel: (sel[e], 0, 0)),  # W_out
            pl.BlockSpec((1, bn, 1), lambda e, t, sel: (sel[e], 0, 0)),   # b_out
            pl.BlockSpec((1, bn, bn), lambda e, t, sel: (sel[e], 0, 0)),  # W_gate
            pl.BlockSpec((1, bn, 1), lambda e, t, sel: (sel[e], 0, 0)),   # b_gate
            pl.BlockSpec((1, ic, bn), lambda e, t, sel: (sel[e], 0, 0)),  # W_mask
            pl.BlockSpec((1, K, ic), lambda e, t, sel: (sel[e], 0, 0)),   # W_dec^T
        ],
        out_specs=pl.BlockSpec((1, P, K, f_tile), lambda e, t, sel: (e, 0, 0, t)),
        scratch_shapes=[pltpu.VMEM((bn, P * f_tile), jnp.bfloat16)],
    )

    return pl.pallas_call(
        kernel,
        out_shape=jax.ShapeDtypeStruct((E, P, K, F), jnp.float32),
        grid_spec=grid_spec,
        compiler_params=pltpu.CompilerParams(
            dimension_semantics=("parallel", "arbitrary")),
    )(sel, x3b, mix_e, mfoldb, colsum, a_all, Wf, bf, Wo, bo, Wg, bg, Wm, WdT)


# ----------------------------- plain-XLA glue --------------------------------

def selector_xla(x3, W1, b1, W2, b2):
    # Conv2d(bn->in,1) -> AvgPool -> ReLU -> Conv2d(in->nd,1).  Pool commutes with
    # the 1x1 conv, so this is two tiny mat-vecs per example; kept in plain XLA.
    mean_x = jnp.mean(x3, axis=2)                       # (E, bn)
    h = jnp.maximum(mean_x @ W1.T + b1, 0.0)            # (E, in_chan)
    return h @ W2.T + b2                                # (E, nd)


def overlap_add(frames, stride):
    """ConvTranspose1d overlap-add.  frames: (E, P, K, F) -> (E, P, T)."""
    E, P, K, F = frames.shape
    T = K + stride * (F - 1)
    wav = jnp.zeros((E, P, T), frames.dtype)
    if K % stride == 0:
        # Decompose the K taps into K//stride non-overlapping pieces; each piece's
        # contribution is a contiguous slab -> K//stride pad+add ops, no scatters.
        for p in range(K // stride):
            piece = frames[:, :, p * stride:(p + 1) * stride, :]       # (E,P,stride,F)
            piece = jnp.transpose(piece, (0, 1, 3, 2)).reshape(E, P, F * stride)
            wav = wav.at[:, :, p * stride:p * stride + F * stride].add(piece)
    else:
        # TODO(synk): kernel_size not a multiple of stride falls back to K strided adds.
        for k in range(K):
            wav = wav.at[:, :, k:k + stride * (F - 1) + 1:stride].add(frames[:, :, k, :])
    return wav


def pack_decoder_params(decoders, bn, P):
    """Stack per-decoder weights (bf16 matmul operands, f32 biases), zero-padding
    first_out to P = max_spks sources."""
    def padrows(w, rows):
        return jnp.pad(w, ((0, rows - w.shape[0]), (0, 0)))
    a_all = jnp.stack([d["prelu_a"].reshape(1, 1) for d in decoders], 0)     # (nd,1,1)
    Wf = jnp.stack([padrows(d["W_first"], P * bn) for d in decoders], 0).astype(jnp.bfloat16)
    bf = jnp.stack([padrows(d["b_first"].reshape(-1, 1), P * bn) for d in decoders], 0)
    Wo = jnp.stack([d["W_out"] for d in decoders], 0).astype(jnp.bfloat16)
    bo = jnp.stack([d["b_out"].reshape(-1, 1) for d in decoders], 0)
    Wg = jnp.stack([d["W_gate"] for d in decoders], 0).astype(jnp.bfloat16)
    bg = jnp.stack([d["b_gate"].reshape(-1, 1) for d in decoders], 0)
    Wm = jnp.stack([d["W_mask"] for d in decoders], 0).astype(jnp.bfloat16)
    WdT = jnp.stack([d["W_dec_T"] for d in decoders], 0).astype(jnp.bfloat16)
    return a_all, Wf, bf, Wo, bo, Wg, bg, Wm, WdT


# ----------------------------- model forward ---------------------------------

def init_params(key, cfg):
    in_chan, bn = cfg["in_chan"], cfg["bn_chan"]
    n_srcs, K = cfg["n_srcs"], cfg["kernel_size"]
    nd = len(n_srcs)
    keys = jax.random.split(key, 4 + 8 * nd)

    def w(k, shape, scale=0.1):
        return (scale * jax.random.normal(k, shape)).astype(jnp.float32)

    params = {
        "selector": (w(keys[0], (in_chan, bn)), w(keys[1], (in_chan,)),
                     w(keys[2], (nd, in_chan)), w(keys[3], (nd,))),
        "decoders": [],
    }
    ki = 4
    for n_src in n_srcs:
        params["decoders"].append({
            "prelu_a": jnp.full((1, 1), 0.25, jnp.float32),
            "W_first": w(keys[ki + 0], (n_src * bn, bn)),
            "b_first": w(keys[ki + 1], (n_src * bn,)),
            "W_out":   w(keys[ki + 2], (bn, bn)),
            "b_out":   w(keys[ki + 3], (bn,)),
            "W_gate":  w(keys[ki + 4], (bn, bn)),
            "b_gate":  w(keys[ki + 5], (bn,)),
            "W_mask":  w(keys[ki + 6], (in_chan, bn)),       # no bias
            "W_dec_T": w(keys[ki + 7], (K, in_chan)),        # transposed-conv filters
        })
        ki += 8
    return params


def decoder_select_forward(params, output_list, mixture_w, ground_truth=None,
                           *, cfg, training=False):
    """Mirrors Decoder_Select.forward (eval mode when training=False)."""
    n_srcs = cfg["n_srcs"]
    nd = len(n_srcs)
    K, stride = cfg["kernel_size"], cfg["stride"]
    chunk, hop = cfg["chunk_size"], cfg["hop_size"]
    bn, ic = cfg["bn_chan"], cfg["in_chan"]
    P = max(n_srcs)
    assert cfg.get("mask_act", "relu") == "relu"  # TODO(synk): other mask activations

    if not training:
        output_list = output_list[-1:]
    NS = len(output_list)
    batch, bn_, ck, n_chunks = output_list[0].shape
    _, ic_, F = mixture_w.shape
    assert bn_ == bn and ic_ == ic and ck == chunk
    E = batch * NS
    S = chunk * n_chunks

    x3 = jnp.stack(output_list, axis=1).reshape(E, bn, S)            # (E, bn, S) f32

    # --- selector (tiny; plain XLA per perf guidance) ---
    W1, b1, W2, b2 = params["selector"]
    sel_logits = selector_xla(x3, W1, b1, W2, b2)                    # (E, nd)
    selector_output = sel_logits.reshape(batch, NS, nd)

    if ground_truth is not None:
        n_src2idx = {s: i for i, s in enumerate(n_srcs)}
        decoder_selected = jnp.asarray(
            [n_src2idx[int(t)] for t in ground_truth], dtype=jnp.int32)
    else:
        assert NS == 1
        decoder_selected = jnp.argmax(
            sel_logits.reshape(batch, -1), axis=1).astype(jnp.int32)
    sel_e = jnp.repeat(decoder_selected, NS) if NS > 1 else decoder_selected  # (E,)

    # --- per-example mixture (kernel reads (ic, F_TILE) blocks directly) ---
    if NS > 1:
        # TODO(synk): training path repeats the mixture across stages (NS-fold copy).
        mix_e = jnp.repeat(mixture_w[:, None], NS, axis=1).reshape(E, ic, F)
    else:
        mix_e = mixture_w

    mfold = build_fold_matrix(chunk, hop, n_chunks, F)               # (S, F) f32
    colsum = jnp.sum(mfold, axis=0, keepdims=True)                   # (1, F) f32
    packed = pack_decoder_params(params["decoders"], bn, P)
    f_tile = _pick_frame_tile(F)

    frames = run_selected_decoders(
        sel_e, x3.astype(jnp.bfloat16), mix_e, mfold.astype(jnp.bfloat16),
        colsum, *packed, n_frames=F, f_tile=f_tile)                  # (E, P, K, F)

    T = K + stride * (F - 1)
    wavs = overlap_add(frames, stride)                               # (E, P, T)

    # zero the padded source slots of the selected decoder (matches reference zeros)
    nsrc_e = jnp.asarray(n_srcs, jnp.int32)[sel_e]                   # (E,)
    valid = (jnp.arange(P)[None, :] < nsrc_e[:, None]).astype(wavs.dtype)
    wavs = wavs * valid[:, :, None]

    output_wavs = wavs.reshape(batch, NS, P, T)
    return output_wavs, selector_output


# ----------------------------- pure-JAX reference (validation only) ----------

def _reference_forward(params, output_list, mixture_w, *, cfg, training=False):
    n_srcs = cfg["n_srcs"]
    K, stride = cfg["kernel_size"], cfg["stride"]
    chunk, hop = cfg["chunk_size"], cfg["hop_size"]
    bn, ic = cfg["bn_chan"], cfg["in_chan"]
    P = max(n_srcs)
    if not training:
        output_list = output_list[-1:]
    NS = len(output_list)
    batch = output_list[0].shape[0]
    n_chunks = output_list[0].shape[-1]
    F = mixture_w.shape[-1]
    E = batch * NS
    x4 = jnp.stack(output_list, 1).reshape(E, bn, chunk, n_chunks)

    W1, b1, W2, b2 = params["selector"]
    hp = jax.lax.Precision.HIGHEST
    pooled = jnp.einsum("oi,eicj->eo", W1, x4, precision=hp) / (chunk * n_chunks) + b1
    sel = jnp.maximum(pooled, 0.0) @ W2.T + b2
    selector_output = sel.reshape(batch, NS, -1)
    decoder_selected = jnp.argmax(sel.reshape(batch, -1), axis=1)

    mixw = jnp.repeat(mixture_w[:, None], NS, axis=1).reshape(E, ic, F)
    T = K + stride * (F - 1)
    all_wavs = []
    for d, n_src in enumerate(n_srcs):
        p = params["decoders"][d]
        a = p["prelu_a"].reshape(())
        xp = jnp.where(x4 >= 0, x4, a * x4)
        y1 = jnp.einsum("oi,eicj->eocj", p["W_first"], xp, precision=hp) \
            + p["b_first"][None, :, None, None]
        y1 = y1.reshape(E * n_src, bn, chunk, n_chunks)
        buf = jnp.zeros((E * n_src, bn, F + 2 * chunk), jnp.float32)
        for j in range(n_chunks):
            buf = buf.at[:, :, j * hop:j * hop + chunk].add(y1[:, :, :, j])
        folded = buf[:, :, chunk:chunk + F]
        gated = jnp.tanh(jnp.einsum("oi,nif->nof", p["W_out"], folded, precision=hp)
                         + p["b_out"][None, :, None]) * \
            jax.nn.sigmoid(jnp.einsum("oi,nif->nof", p["W_gate"], folded, precision=hp)
                           + p["b_gate"][None, :, None])
        mask = jnp.maximum(jnp.einsum("oi,nif->nof", p["W_mask"], gated, precision=hp), 0.0)
        mix_rep = jnp.repeat(mixw[:, None], n_src, axis=1).reshape(E * n_src, ic, F)
        frames = jnp.einsum("ki,nif->nkf", p["W_dec_T"], mask * mix_rep, precision=hp)
        wav = jnp.zeros((E * n_src, T), jnp.float32)
        for k in range(K):
            wav = wav.at[:, k:k + stride * (F - 1) + 1:stride].add(frames[:, k, :])
        wav = wav.reshape(batch, NS, n_src, T)
        wav = jnp.pad(wav, ((0, 0), (0, 0), (0, P - n_src), (0, 0)))
        all_wavs.append(wav)
    all_wavs = jnp.stack(all_wavs, 0)
    output_wavs = all_wavs[decoder_selected, jnp.arange(batch)]
    return output_wavs, selector_output


# ----------------------------- demo -------------------------------------------

if __name__ == "__main__":
    cfg = dict(kernel_size=16, stride=8, in_chan=64, n_srcs=[2, 3],
               bn_chan=32, chunk_size=16, hop_size=8, mask_act="relu")
    batch, n_frames = 2, 128
    # fold constraint: n_chunks = (n_frames + chunk)/hop + 1
    n_chunks = (n_frames + cfg["chunk_size"]) // cfg["hop_size"] + 1   # 19
    n_repeats = 2

    key = jax.random.PRNGKey(0)
    kp, k1, k2 = jax.random.split(key, 3)
    params = init_params(kp, cfg)

    output_list = [
        jax.random.normal(k, (batch, cfg["bn_chan"], cfg["chunk_size"], n_chunks),
                          dtype=jnp.float32)
        for k in jax.random.split(k1, n_repeats)
    ]
    mixture_w = jax.random.normal(k2, (batch, cfg["in_chan"], n_frames),
                                  dtype=jnp.float32)

    fwd = jax.jit(functools.partial(decoder_select_forward, cfg=cfg, training=False))
    output_wavs, selector_output = fwd(params, output_list, mixture_w)
    jax.block_until_ready((output_wavs, selector_output))

    T = cfg["kernel_size"] + cfg["stride"] * (n_frames - 1)
    assert output_wavs.shape == (batch, 1, max(cfg["n_srcs"]), T)
    assert selector_output.shape == (batch, 1, len(cfg["n_srcs"]))

    # numerical check against a straightforward pure-JAX (f32, HIGHEST) reference
    ref_fwd = jax.jit(functools.partial(_reference_forward, cfg=cfg, training=False))
    ref_wavs, ref_sel = ref_fwd(params, output_list, mixture_w)
    jax.block_until_ready((ref_wavs, ref_sel))
    wav_err = float(jnp.max(jnp.abs(output_wavs - ref_wavs))
                    / (jnp.max(jnp.abs(ref_wavs)) + 1e-6))
    sel_err = float(jnp.max(jnp.abs(selector_output - ref_sel))
                    / (jnp.max(jnp.abs(ref_sel)) + 1e-6))
    # bf16 matmul operands (f32 accumulation) -> slightly looser wav tolerance
    assert wav_err < 5e-2, wav_err
    assert sel_err < 1e-2, sel_err

    print("KERNEL_OK")
</pallas_src>

<mosaic_0001>
module attributes {stable_mosaic.version = 11 : i64} {
  func.func @_decoder_kernel(%arg0: i32, %arg1: i32, %arg2: memref<2xi32, #tpu.memory_space<smem>>, %arg3: memref<1x32x304xbf16, #tpu.memory_space<vmem>>, %arg4: memref<1x64x128xf32, #tpu.memory_space<vmem>>, %arg5: memref<304x128xbf16, #tpu.memory_space<vmem>>, %arg6: memref<1x128xf32, #tpu.memory_space<vmem>>, %arg7: memref<1x1x1xf32, #tpu.memory_space<vmem>>, %arg8: memref<1x96x32xbf16, #tpu.memory_space<vmem>>, %arg9: memref<1x96x1xf32, #tpu.memory_space<vmem>>, %arg10: memref<1x32x32xbf16, #tpu.memory_space<vmem>>, %arg11: memref<1x32x1xf32, #tpu.memory_space<vmem>>, %arg12: memref<1x32x32xbf16, #tpu.memory_space<vmem>>, %arg13: memref<1x32x1xf32, #tpu.memory_space<vmem>>, %arg14: memref<1x64x32xbf16, #tpu.memory_space<vmem>>, %arg15: memref<1x16x64xbf16, #tpu.memory_space<vmem>>, %arg16: memref<1x3x16x128xf32, #tpu.memory_space<vmem>>, %arg17: memref<32x384xbf16, #tpu.memory_space<vmem>>) attributes {dimension_semantics = [#tpu.dimension_semantics<parallel>, #tpu.dimension_semantics<arbitrary>], iteration_bounds = array<i64: 2, 1>, scalar_prefetch = 1 : i64, scratch_operands = 1 : i64, tpu.core_type = #tpu.core_type<tc>, window_params = [{transform_indices = @transform_0, window_bounds = array<i64: 1, 32, 304>}, {transform_indices = @transform_1, window_bounds = array<i64: 1, 64, 128>}, {transform_indices = @transform_2, window_bounds = array<i64: 304, 128>}, {transform_indices = @transform_3, window_bounds = array<i64: 1, 128>}, {transform_indices = @transform_4, window_bounds = array<i64: 1, 1, 1>}, {transform_indices = @transform_5, window_bounds = array<i64: 1, 96, 32>}, {transform_indices = @transform_6, window_bounds = array<i64: 1, 96, 1>}, {transform_indices = @transform_7, window_bounds = array<i64: 1, 32, 32>}, {transform_indices = @transform_8, window_bounds = array<i64: 1, 32, 1>}, {transform_indices = @transform_9, window_bounds = array<i64: 1, 32, 32>}, {transform_indices = @transform_10, window_bounds = array<i64: 1, 32, 1>}, {transform_indices = @transform_11, window_bounds = array<i64: 1, 64, 32>}, {transform_indices = @transform_12, window_bounds = array<i64: 1, 16, 64>}, {transform_indices = @transform_13, window_bounds = array<i64: 1, 3, 16, 128>}]} {
    %c0 = arith.constant 0 : index
    %c0_0 = arith.constant 0 : index
    %c0_1 = arith.constant 0 : index
    %0 = vector.load %arg7[%c0, %c0_0, %c0_1] : memref<1x1x1xf32, #tpu.memory_space<vmem>>, vector<1x1x1xf32>
    %1 = vector.extract %0[0, 0, 0] : f32 from vector<1x1x1xf32>
    %c0_2 = arith.constant 0 : index
    %c0_3 = arith.constant 0 : index
    %c0_4 = arith.constant 0 : index
    %2 = vector.load %arg3[%c0_2, %c0_3, %c0_4] : memref<1x32x304xbf16, #tpu.memory_space<vmem>>, vector<1x32x304xbf16>
    %3 = vector.shape_cast %2 : vector<1x32x304xbf16> to vector<32x304xbf16>
    %4 = arith.extf %3 : vector<32x304xbf16> to vector<32x304xf32>
    %cst = arith.constant 0.000000e+00 : f32
    %5 = vector.broadcast %cst : f32 to vector<32x304xf32>
    %6 = arith.cmpf oge, %4, %5 : vector<32x304xf32>
    %7 = vector.broadcast %1 : f32 to vector<32x304xf32>
    %8 = arith.mulf %7, %4 : vector<32x304xf32>
    %9 = arith.select %6, %4, %8 : vector<32x304xi1>, vector<32x304xf32>
    %10 = arith.truncf %9 : vector<32x304xf32> to vector<32x304xbf16>
    %c0_5 = arith.constant 0 : index
    %c0_6 = arith.constant 0 : index
    %11 = vector.load %arg5[%c0_5, %c0_6] : memref<304x128xbf16, #tpu.memory_space<vmem>>, vector<304x128xbf16>
    %cst_7 = arith.constant dense<0.000000e+00> : vector<32x128xf32>
    %12 = tpu.matmul %10, %11, %cst_7 {dimension_numbers = #tpu.dot_dimension_numbers<[1], [0], [0], [1], [0, 0, 1, 1], [], []>} : vector<32x304xbf16>, vector<304x128xbf16>, vector<32x128xf32> -> vector<32x128xf32>
    %13 = arith.truncf %12 : vector<32x128xf32> to vector<32x128xbf16>
    %c0_8 = arith.constant 0 : index
    %c0_9 = arith.constant 0 : index
    %c0_10 = arith.constant 0 : index
    %14 = vector.load %arg8[%c0_8, %c0_9, %c0_10] : memref<1x96x32xbf16, #tpu.memory_space<vmem>>, vector<1x96x32xbf16>
    %15 = vector.shape_cast %14 : vector<1x96x32xbf16> to vector<96x32xbf16>
    %c0_11 = arith.constant 0 : index
    %c0_12 = arith.constant 0 : index
    %c0_13 = arith.constant 0 : index
    %16 = vector.load %arg9[%c0_11, %c0_12, %c0_13] : memref<1x96x1xf32, #tpu.memory_space<vmem>>, vector<1x96x1xf32>
    %17 = vector.shape_cast %16 : vector<1x96x1xf32> to vector<96x1xf32>
    %c0_14 = arith.constant 0 : index
    %c0_15 = arith.constant 0 : index
    %18 = vector.load %arg6[%c0_14, %c0_15] : memref<1x128xf32, #tpu.memory_space<vmem>>, vector<1x128xf32>
    %19 = vector.extract_strided_slice %15 {offsets = [0, 0], sizes = [32, 32], strides = [1, 1]} : vector<96x32xbf16> to vector<32x32xbf16>
    %cst_16 = arith.constant dense<0.000000e+00> : vector<32x128xf32>
    %20 = tpu.matmul %19, %13, %cst_16 {dimension_numbers = #tpu.dot_dimension_numbers<[1], [0], [0], [1], [0, 0, 1, 1], [], []>} : vector<32x32xbf16>, vector<32x128xbf16>, vector<32x128xf32> -> vector<32x128xf32>
    %21 = vector.extract_strided_slice %17 {offsets = [0, 0], sizes = [32, 1], strides = [1, 1]} : vector<96x1xf32> to vector<32x1xf32>
    %22 = vector.broadcast %21 : vector<32x1xf32> to vector<32x128xf32>
    %23 = vector.broadcast %18 : vector<1x128xf32> to vector<32x128xf32>
    %24 = arith.mulf %22, %23 : vector<32x128xf32>
    %25 = arith.addf %20, %24 : vector<32x128xf32>
    %26 = arith.truncf %25 : vector<32x128xf32> to vector<32x128xbf16>
    %c0_17 = arith.constant 0 : index
    %c0_18 = arith.constant 0 : index
    %27 = vector.load %arg17[%c0_17, %c0_18] : memref<32x384xbf16, #tpu.memory_space<vmem>>, vector<32x128xbf16>
    tpu.vector_store %arg17[%c0_17, %c0_18], %26 {strides = array<i32>} : memref<32x384xbf16, #tpu.memory_space<vmem>>, vector<32x128xbf16>,
    %28 = vector.extract_strided_slice %15 {offsets = [32, 0], sizes = [32, 32], strides = [1, 1]} : vector<96x32xbf16> to vector<32x32xbf16>
    %cst_19 = arith.constant dense<0.000000e+00> : vector<32x128xf32>
    %29 = tpu.matmul %28, %13, %cst_19 {dimension_numbers = #tpu.dot_dimension_numbers<[1], [0], [0], [1], [0, 0, 1, 1], [], []>} : vector<32x32xbf16>, vector<32x128xbf16>, vector<32x128xf32> -> vector<32x128xf32>
    %30 = vector.extract_strided_slice %17 {offsets = [32, 0], sizes = [32, 1], strides = [1, 1]} : vector<96x1xf32> to vector<32x1xf32>
    %31 = vector.broadcast %30 : vector<32x1xf32> to vector<32x128xf32>
    %32 = vector.broadcast %18 : vector<1x128xf32> to vector<32x128xf32>
    %33 = arith.mulf %31, %32 : vector<32x128xf32>
    %34 = arith.addf %29, %33 : vector<32x128xf32>
    %35 = arith.truncf %34 : vector<32x128xf32> to vector<32x128xbf16>
    %c0_20 = arith.constant 0 : index
    %c128 = arith.constant 128 : index
    %36 = vector.load %arg17[%c0_20, %c128] : memref<32x384xbf16, #tpu.memory_space<vmem>>, vector<32x128xbf16>
    tpu.vector_store %arg17[%c0_20, %c128], %35 {strides = array<i32>} : memref<32x384xbf16, #tpu.memory_space<vmem>>, vector<32x128xbf16>,
    %37 = vector.extract_strided_slice %15 {offsets = [64, 0], sizes = [32, 32], strides = [1, 1]} : vector<96x32xbf16> to vector<32x32xbf16>
    %cst_21 = arith.constant dense<0.000000e+00> : vector<32x128xf32>
    %38 = tpu.matmul %37, %13, %cst_21 {dimension_numbers = #tpu.dot_dimension_numbers<[1], [0], [0], [1], [0, 0, 1, 1], [], []>} : vector<32x32xbf16>, vector<32x128xbf16>, vector<32x128xf32> -> vector<32x128xf32>
    %39 = vector.extract_strided_slice %17 {offsets = [64, 0], sizes = [32, 1], strides = [1, 1]} : vector<96x1xf32> to vector<32x1xf32>
    %40 = vector.broadcast %39 : vector<32x1xf32> to vector<32x128xf32>
    %41 = vector.broadcast %18 : vector<1x128xf32> to vector<32x128xf32>
    %42 = arith.mulf %40, %41 : vector<32x128xf32>
    %43 = arith.addf %38, %42 : vector<32x128xf32>
    %44 = arith.truncf %43 : vector<32x128xf32> to vector<32x128xbf16>
    %c0_22 = arith.constant 0 : index
    %c256 = arith.constant 256 : index
    %45 = vector.load %arg17[%c0_22, %c256] : memref<32x384xbf16, #tpu.memory_space<vmem>>, vector<32x128xbf16>
    tpu.vector_store %arg17[%c0_22, %c256], %44 {strides = array<i32>} : memref<32x384xbf16, #tpu.memory_space<vmem>>, vector<32x128xbf16>,
    %c0_23 = arith.constant 0 : index
    %c0_24 = arith.constant 0 : index
    %46 = vector.load %arg17[%c0_23, %c0_24] : memref<32x384xbf16, #tpu.memory_space<vmem>>, vector<32x384xbf16>
    %c0_25 = arith.constant 0 : index
    %c0_26 = arith.constant 0 : index
    %c0_27 = arith.constant 0 : index
    %47 = vector.load %arg10[%c0_25, %c0_26, %c0_27] : memref<1x32x32xbf16, #tpu.memory_space<vmem>>, vector<1x32x32xbf16>
    %48 = vector.shape_cast %47 : vector<1x32x32xbf16> to vector<32x32xbf16>
    %cst_28 = arith.constant dense<0.000000e+00> : vector<32x384xf32>
    %49 = tpu.matmul %48, %46, %cst_28 {dimension_numbers = #tpu.dot_dimension_numbers<[1], [0], [0], [1], [0, 0, 1, 1], [], []>} : vector<32x32xbf16>, vector<32x384xbf16>, vector<32x384xf32> -> vector<32x384xf32>
    %c0_29 = arith.constant 0 : index
    %c0_30 = arith.constant 0 : index
    %c0_31 = arith.constant 0 : index
    %50 = vector.load %arg11[%c0_29, %c0_30, %c0_31] : memref<1x32x1xf32, #tpu.memory_space<vmem>>, vector<1x32x1xf32>
    %51 = vector.shape_cast %50 : vector<1x32x1xf32> to vector<32x1xf32>
    %52 = vector.broadcast %51 : vector<32x1xf32> to vector<32x384xf32>
    %53 = arith.addf %49, %52 : vector<32x384xf32>
    %c0_32 = arith.constant 0 : index
    %c0_33 = arith.constant 0 : index
    %c0_34 = arith.constant 0 : index
    %54 = vector.load %arg12[%c0_32, %c0_33, %c0_34] : memref<1x32x32xbf16, #tpu.memory_space<vmem>>, vector<1x32x32xbf16>
    %55 = vector.shape_cast %54 : vector<1x32x32xbf16> to vector<32x32xbf16>
    %cst_35 = arith.constant dense<0.000000e+00> : vector<32x384xf32>
    %56 = tpu.matmul %55, %46, %cst_35 {dimension_numbers = #tpu.dot_dimension_numbers<[1], [0], [0], [1], [0, 0, 1, 1], [], []>} : vector<32x32xbf16>, vector<32x384xbf16>, vector<32x384xf32> -> vector<32x384xf32>
    %c0_36 = arith.constant 0 : index
    %c0_37 = arith.constant 0 : index
    %c0_38 = arith.constant 0 : index
    %57 = vector.load %arg13[%c0_36, %c0_37, %c0_38] : memref<1x32x1xf32, #tpu.memory_space<vmem>>, vector<1x32x1xf32>
    %58 = vector.shape_cast %57 : vector<1x32x1xf32> to vector<32x1xf32>
    %59 = vector.broadcast %58 : vector<32x1xf32> to vector<32x384xf32>
    %60 = arith.addf %56, %59 : vector<32x384xf32>
    %61 = math.tanh %53 : vector<32x384xf32>
    %cst_39 = arith.constant 5.000000e-01 : f32
    %62 = vector.broadcast %cst_39 : f32 to vector<32x384xf32>
    %63 = arith.mulf %62, %60 : vector<32x384xf32>
    %64 = math.tanh %63 : vector<32x384xf32>
    %cst_40 = arith.constant 1.000000e+00 : f32
    %65 = vector.broadcast %cst_40 : f32 to vector<32x384xf32>
    %66 = arith.addf %65, %64 : vector<32x384xf32>
    %cst_41 = arith.constant 5.000000e-01 : f32
    %67 = vector.broadcast %cst_41 : f32 to vector<32x384xf32>
    %68 = arith.mulf %67, %66 : vector<32x384xf32>
    %69 = arith.mulf %61, %68 : vector<32x384xf32>
    %c0_42 = arith.constant 0 : index
    %c0_43 = arith.constant 0 : index
    %c0_44 = arith.constant 0 : index
    %70 = vector.load %arg14[%c0_42, %c0_43, %c0_44] : memref<1x64x32xbf16, #tpu.memory_space<vmem>>, vector<1x64x32xbf16>
    %71 = vector.shape_cast %70 : vector<1x64x32xbf16> to vector<64x32xbf16>
    %72 = arith.truncf %69 : vector<32x384xf32> to vector<32x384xbf16>
    %cst_45 = arith.constant dense<0.000000e+00> : vector<64x384xf32>
    %73 = tpu.matmul %71, %72, %cst_45 {dimension_numbers = #tpu.dot_dimension_numbers<[1], [0], [0], [1], [0, 0, 1, 1], [], []>} : vector<64x32xbf16>, vector<32x384xbf16>, vector<64x384xf32> -> vector<64x384xf32>
    %cst_46 = arith.constant 0.000000e+00 : f32
    %74 = vector.broadcast %cst_46 : f32 to vector<64x384xf32>
    %75 = arith.maximumf %73, %74 : vector<64x384xf32>
    %c0_47 = arith.constant 0 : index
    %c0_48 = arith.constant 0 : index
    %c0_49 = arith.constant 0 : index
    %76 = vector.load %arg4[%c0_47, %c0_48, %c0_49] : memref<1x64x128xf32, #tpu.memory_space<vmem>>, vector<1x64x128xf32>
    %77 = vector.shape_cast %76 : vector<1x64x128xf32> to vector<64x128xf32>
    %c0_50 = arith.constant 0 : index
    %c0_51 = arith.constant 0 : index
    %c0_52 = arith.constant 0 : index
    %78 = vector.load %arg15[%c0_50, %c0_51, %c0_52] : memref<1x16x64xbf16, #tpu.memory_space<vmem>>, vector<1x16x64xbf16>
    %79 = vector.shape_cast %78 : vector<1x16x64xbf16> to vector<16x64xbf16>
    %80 = vector.extract_strided_slice %75 {offsets = [0, 0], sizes = [64, 128], strides = [1, 1]} : vector<64x384xf32> to vector<64x128xf32>
    %81 = arith.mulf %80, %77 : vector<64x128xf32>
    %82 = arith.truncf %81 : vector<64x128xf32> to vector<64x128xbf16>
    %cst_53 = arith.constant dense<0.000000e+00> : vector<16x128xf32>
    %83 = tpu.matmul %79, %82, %cst_53 {dimension_numbers = #tpu.dot_dimension_numbers<[1], [0], [0], [1], [0, 0, 1, 1], [], []>} : vector<16x64xbf16>, vector<64x128xbf16>, vector<16x128xf32> -> vector<16x128xf32>
    %c0_54 = arith.constant 0 : index
    %c0_55 = arith.constant 0 : index
    %c0_56 = arith.constant 0 : index
    %c0_57 = arith.constant 0 : index
    %84 = vector.load %arg16[%c0_54, %c0_55, %c0_56, %c0_57] : memref<1x3x16x128xf32, #tpu.memory_space<vmem>>, vector<1x1x16x128xf32>
    %85 = vector.shape_cast %84 : vector<1x1x16x128xf32> to vector<16x128xf32>
    %86 = vector.shape_cast %83 : vector<16x128xf32> to vector<1x1x16x128xf32>
    tpu.vector_store %arg16[%c0_54, %c0_55, %c0_56, %c0_57], %86 {strides = array<i32>} : memref<1x3x16x128xf32, #tpu.memory_space<vmem>>, vector<1x1x16x128xf32>,
    %87 = vector.extract_strided_slice %75 {offsets = [0, 128], sizes = [64, 128], strides = [1, 1]} : vector<64x384xf32> to vector<64x128xf32>
    %88 = arith.mulf %87, %77 : vector<64x128xf32>
    %89 = arith.truncf %88 : vector<64x128xf32> to vector<64x128xbf16>
    %cst_58 = arith.constant dense<0.000000e+00> : vector<16x128xf32>
    %90 = tpu.matmul %79, %89, %cst_58 {dimension_numbers = #tpu.dot_dimension_numbers<[1], [0], [0], [1], [0, 0, 1, 1], [], []>} : vector<16x64xbf16>, vector<64x128xbf16>, vector<16x128xf32> -> vector<16x128xf32>
    %c0_59 = arith.constant 0 : index
    %c1 = arith.constant 1 : index
    %c0_60 = arith.constant 0 : index
    %c0_61 = arith.constant 0 : index
    %91 = vector.load %arg16[%c0_59, %c1, %c0_60, %c0_61] : memref<1x3x16x128xf32, #tpu.memory_space<vmem>>, vector<1x1x16x128xf32>
    %92 = vector.shape_cast %91 : vector<1x1x16x128xf32> to vector<16x128xf32>
    %93 = vector.shape_cast %90 : vector<16x128xf32> to vector<1x1x16x128xf32>
    tpu.vector_store %arg16[%c0_59, %c1, %c0_60, %c0_61], %93 {strides = array<i32>} : memref<1x3x16x128xf32, #tpu.memory_space<vmem>>, vector<1x1x16x128xf32>,
    %94 = vector.extract_strided_slice %75 {offsets = [0, 256], sizes = [64, 128], strides = [1, 1]} : vector<64x384xf32> to vector<64x128xf32>
    %95 = arith.mulf %94, %77 : vector<64x128xf32>
    %96 = arith.truncf %95 : vector<64x128xf32> to vector<64x128xbf16>
    %cst_62 = arith.constant dense<0.000000e+00> : vector<16x128xf32>
    %97 = tpu.matmul %79, %96, %cst_62 {dimension_numbers = #tpu.dot_dimension_numbers<[1], [0], [0], [1], [0, 0, 1, 1], [], []>} : vector<16x64xbf16>, vector<64x128xbf16>, vector<16x128xf32> -> vector<16x128xf32>
    %c0_63 = arith.constant 0 : index
    %c2 = arith.constant 2 : index
    %c0_64 = arith.constant 0 : index
    %c0_65 = arith.constant 0 : index
    %98 = vector.load %arg16[%c0_63, %c2, %c0_64, %c0_65] : memref<1x3x16x128xf32, #tpu.memory_space<vmem>>, vector<1x1x16x128xf32>
    %99 = vector.shape_cast %98 : vector<1x1x16x128xf32> to vector<16x128xf32>
    %100 = vector.shape_cast %97 : vector<16x128xf32> to vector<1x1x16x128xf32>
    tpu.vector_store %arg16[%c0_63, %c2, %c0_64, %c0_65], %100 {strides = array<i32>} : memref<1x3x16x128xf32, #tpu.memory_space<vmem>>, vector<1x1x16x128xf32>,
    return
  }
  func.func @transform_0(%arg0: i32, %arg1: i32, %arg2: memref<2xi32, #tpu.memory_space<smem>>) -> (i32, i32, i32) {
    %c0_i32 = arith.constant 0 : i32
    %c0_i32_0 = arith.constant 0 : i32
    %c0_i32_1 = arith.constant 0 : i32
    return %arg0, %c0_i32, %c0_i32_0 : i32, i32, i32
  }
  func.func @transform_1(%arg0: i32, %arg1: i32, %arg2: memref<2xi32, #tpu.memory_space<smem>>) -> (i32, i32, i32) {
    %c0_i32 = arith.constant 0 : i32
    %c0_i32_0 = arith.constant 0 : i32
    return %arg0, %c0_i32, %arg1 : i32, i32, i32
  }
  func.func @transform_2(%arg0: i32, %arg1: i32, %arg2: memref<2xi32, #tpu.memory_space<smem>>) -> (i32, i32) {
    %c0_i32 = arith.constant 0 : i32
    %c0_i32_0 = arith.constant 0 : i32
    return %c0_i32, %arg1 : i32, i32
  }
  func.func @transform_3(%arg0: i32, %arg1: i32, %arg2: memref<2xi32, #tpu.memory_space<smem>>) -> (i32, i32) {
    %c0_i32 = arith.constant 0 : i32
    %c0_i32_0 = arith.constant 0 : i32
    return %c0_i32, %arg1 : i32, i32
  }
  func.func @transform_4(%arg0: i32, %arg1: i32, %arg2: memref<2xi32, #tpu.memory_space<smem>>) -> (i32, i32, i32) {
    %0 = arith.index_cast %arg0 : i32 to index
    %1 = memref.load %arg2[%0] : memref<2xi32, #tpu.memory_space<smem>>
    %c0_i32 = arith.constant 0 : i32
    %c0_i32_0 = arith.constant 0 : i32
    %c0_i32_1 = arith.constant 0 : i32
    return %1, %c0_i32, %c0_i32_0 : i32, i32, i32
  }
  func.func @transform_5(%arg0: i32, %arg1: i32, %arg2: memref<2xi32, #tpu.memory_space<smem>>) -> (i32, i32, i32) {
    %0 = arith.index_cast %arg0 : i32 to index
    %1 = memref.load %arg2[%0] : memref<2xi32, #tpu.memory_space<smem>>
    %c0_i32 = arith.constant 0 : i32
    %c0_i32_0 = arith.constant 0 : i32
    %c0_i32_1 = arith.constant 0 : i32
    return %1, %c0_i32, %c0_i32_0 : i32, i32, i32
  }
  func.func @transform_6(%arg0: i32, %arg1: i32, %arg2: memref<2xi32, #tpu.memory_space<smem>>) -> (i32, i32, i32) {
    %0 = arith.index_cast %arg0 : i32 to index
    %1 = memref.load %arg2[%0] : memref<2xi32, #tpu.memory_space<smem>>
    %c0_i32 = arith.constant 0 : i32
    %c0_i32_0 = arith.constant 0 : i32
    %c0_i32_1 = arith.constant 0 : i32
    return %1, %c0_i32, %c0_i32_0 : i32, i32, i32
  }
  func.func @transform_7(%arg0: i32, %arg1: i32, %arg2: memref<2xi32, #tpu.memory_space<smem>>) -> (i32, i32, i32) {
    %0 = arith.index_cast %arg0 : i32 to index
    %1 = memref.load %arg2[%0] : memref<2xi32, #tpu.memory_space<smem>>
    %c0_i32 = arith.constant 0 : i32
    %c0_i32_0 = arith.constant 0 : i32
    %c0_i32_1 = arith.constant 0 : i32
    return %1, %c0_i32, %c0_i32_0 : i32, i32, i32
  }
  func.func @transform_8(%arg0: i32, %arg1: i32, %arg2: memref<2xi32, #tpu.memory_space<smem>>) -> (i32, i32, i32) {
    %0 = arith.index_cast %arg0 : i32 to index
    %1 = memref.load %arg2[%0] : memref<2xi32, #tpu.memory_space<smem>>
    %c0_i32 = arith.constant 0 : i32
    %c0_i32_0 = arith.constant 0 : i32
    %c0_i32_1 = arith.constant 0 : i32
    return %1, %c0_i32, %c0_i32_0 : i32, i32, i32
  }
  func.func @transform_9(%arg0: i32, %arg1: i32, %arg2: memref<2xi32, #tpu.memory_space<smem>>) -> (i32, i32, i32) {
    %0 = arith.index_cast %arg0 : i32 to index
    %1 = memref.load %arg2[%0] : memref<2xi32, #tpu.memory_space<smem>>
    %c0_i32 = arith.constant 0 : i32
    %c0_i32_0 = arith.constant 0 : i32
    %c0_i32_1 = arith.constant 0 : i32
    return %1, %c0_i32, %c0_i32_0 : i32, i32, i32
  }
  func.func @transform_10(%arg0: i32, %arg1: i32, %arg2: memref<2xi32, #tpu.memory_space<smem>>) -> (i32, i32, i32) {
    %0 = arith.index_cast %arg0 : i32 to index
    %1 = memref.load %arg2[%0] : memref<2xi32, #tpu.memory_space<smem>>
    %c0_i32 = arith.constant 0 : i32
    %c0_i32_0 = arith.constant 0 : i32
    %c0_i32_1 = arith.constant 0 : i32
    return %1, %c0_i32, %c0_i32_0 : i32, i32, i32
  }
  func.func @transform_11(%arg0: i32, %arg1: i32, %arg2: memref<2xi32, #tpu.memory_space<smem>>) -> (i32, i32, i32) {
    %0 = arith.index_cast %arg0 : i32 to index
    %1 = memref.load %arg2[%0] : memref<2xi32, #tpu.memory_space<smem>>
    %c0_i32 = arith.constant 0 : i32
    %c0_i32_0 = arith.constant 0 : i32
    %c0_i32_1 = arith.constant 0 : i32
    return %1, %c0_i32, %c0_i32_0 : i32, i32, i32
  }
  func.func @transform_12(%arg0: i32, %arg1: i32, %arg2: memref<2xi32, #tpu.memory_space<smem>>) -> (i32, i32, i32) {
    %0 = arith.index_cast %arg0 : i32 to index
    %1 = memref.load %arg2[%0] : memref<2xi32, #tpu.memory_space<smem>>
    %c0_i32 = arith.constant 0 : i32
    %c0_i32_0 = arith.constant 0 : i32
    %c0_i32_1 = arith.constant 0 : i32
    return %1, %c0_i32, %c0_i32_0 : i32, i32, i32
  }
  func.func @transform_13(%arg0: i32, %arg1: i32, %arg2: memref<2xi32, #tpu.memory_space<smem>>) -> (i32, i32, i32, i32) {
    %c0_i32 = arith.constant 0 : i32
    %c0_i32_0 = arith.constant 0 : i32
    %c0_i32_1 = arith.constant 0 : i32
    return %arg0, %c0_i32, %c0_i32_0, %arg1 : i32, i32, i32, i32
  }
}

</mosaic_0001>

<llo_original>
// kernel: decoder_select_forward.1
$region0: #{decoder_select_forward.1}
  #allocation0 [shape = 'u32[]', space=smem, size = 0x4, offset = 0x4, fixed_abs, tag = 'smem constant byte address 0x4 - core index']
  #allocation1 [shape = 'u32[144,128]{1,0:T(1,128)}', space=vmem, size = 0x12000, scoped, tag = 'internal scratch']
  #allocation2 [shape = 'bf16[32,384]{1,0:T(16,128)(2,1)}', space=vmem, size = 0x6000, scoped, tag = 'scratch operand']
  #allocation3 [shape = 's32[1]{0}', space=sflag, size = 0x4, scoped, tag = 'scoped memory for decoder_select_forward.1']
  #allocation4 [shape = 'u8[512]{0}', space=smem, size = 0x200, scoped, tag = 'prefetched SMEM operand 0']
  %s0 = inlined_call_operand.vmem [shape: s32[2], index: 0, kind: input, shape index: {}]
  %s1 = inlined_call_operand.vmem [shape: bf16[2,32,304], index: 1, kind: input, shape index: {}]
  %s2 = inlined_call_operand.vmem [shape: f32[2,64,128], index: 2, kind: input, shape index: {}]
  %s3 = inlined_call_operand.vmem [shape: bf16[304,128], index: 3, kind: input, shape index: {}]
  %s4 = inlined_call_operand.vmem [shape: f32[1,128], index: 4, kind: input, shape index: {}]
  %s5 = inlined_call_operand.vmem [shape: f32[2,1,1], index: 5, kind: input, shape index: {}]
  %s6 = inlined_call_operand.vmem [shape: bf16[2,96,32], index: 6, kind: input, shape index: {}]
  %s7 = inlined_call_operand.vmem [shape: f32[2,96,1], index: 7, kind: input, shape index: {}]
  %s8 = inlined_call_operand.vmem [shape: bf16[2,32,32], index: 8, kind: input, shape index: {}]
  %s9 = inlined_call_operand.vmem [shape: f32[2,32,1], index: 9, kind: input, shape index: {}]
  %s10 = inlined_call_operand.vmem [shape: bf16[2,32,32], index: 10, kind: input, shape index: {}]
  %s11 = inlined_call_operand.vmem [shape: f32[2,32,1], index: 11, kind: input, shape index: {}]
  %s12 = inlined_call_operand.vmem [shape: bf16[2,64,32], index: 12, kind: input, shape index: {}]
  %s13 = inlined_call_operand.vmem [shape: bf16[2,16,64], index: 13, kind: input, shape index: {}]
  %s14 = inlined_call_operand.vmem [shape: f32[2,3,16,128], index: 14, kind: output, shape index: {}]
  %s15 = sld [smem:[#allocation0]]
  $region85: #{decoder_select_forward.1} parent=0
    _
  %s17 = ssub.s32 1, %s15
  %s18 = scalar_select 0, %s17, %s15
  %s19 = sshll.u32 %s0, 4
  %s20 = int_to_ptr.vmem [resolvable:$true] %s19
  %22 = dma.vmem_to_smem %s20, 16, [#allocation4], [#allocation3]
  %23 = dma.done [#allocation3], 16
  %24 = sfence
  loop: start=0, step=1, limit=4
  $region2: #{decoder_select_forward.1} parent=0 // loop_pre_header
    _
  $region3: #{decoder_select_forward.1} parent=0 // loop_header
    %s26 = sphi 0, %s30
    %p27 = scmp.ge.s32.totalorder %s26, 4
    %s33 = sphi 0, %s45
    %s34 = sphi 0, %s41
    %s35 = sphi 0, %s33
    %s36 = sphi 0, %s34
    %s37 = sphi 0, %s35
    %s38 = sphi 0, %s36
    %s48 = sphi 0, %s50
    %s51 = sphi 0, %s48
    %s52 = sphi 0, %s51
    %s68 = sphi 0, %s52
    %s76 = sphi 0, %s78
    %s79 = sphi 0, %s76
    %s80 = sphi 0, %s79
    %s96 = sphi 0, %s80
    %s102 = sphi 0, %s104
    %s105 = sphi 0, %s102
    %s106 = sphi 0, %s105
    %s122 = sphi 0, %s106
    %s128 = sphi 0, %s130
    %s131 = sphi 0, %s128
    %s132 = sphi 0, %s131
    %s148 = sphi 0, %s132
    %s156 = sphi 0, %s158
    %s159 = sphi 0, %s156
    %s160 = sphi 0, %s159
    %s176 = sphi 0, %s160
    %s184 = sphi 0, %s186
    %s187 = sphi 0, %s184
    %s188 = sphi 0, %s187
    %s204 = sphi 0, %s188
    %s212 = sphi 0, %s214
    %s215 = sphi 0, %s212
    %s216 = sphi 0, %s215
    %s232 = sphi 0, %s216
    %s240 = sphi 0, %s242
    %s243 = sphi 0, %s240
    %s244 = sphi 0, %s243
    %s260 = sphi 0, %s244
    %s268 = sphi 0, %s270
    %s271 = sphi 0, %s268
    %s272 = sphi 0, %s271
    %s288 = sphi 0, %s272
    %s296 = sphi 0, %s298
    %s299 = sphi 0, %s296
    %s300 = sphi 0, %s299
    %s316 = sphi 0, %s300
    %s324 = sphi 0, %s326
    %s327 = sphi 0, %s324
    %s328 = sphi 0, %s327
    %s344 = sphi 0, %s328
    %s352 = sphi 0, %s354
    %s355 = sphi 0, %s352
    %s356 = sphi 0, %s355
    %s372 = sphi 0, %s356
    %s380 = sphi 0, %s382
    %s383 = sphi 0, %s380
    %s384 = sphi 0, %s383
    %s400 = sphi 0, %s384
    %s408 = sphi 0, %s410
    %s411 = sphi 0, %s408
    %s412 = sphi 0, %s411
    %s428 = sphi 0, %s412
  $region4: #{decoder_select_forward.1} parent=0 // loop_header_branch
    %29 = sbr.rel (%p27) target = $region8
  $region5: #{decoder_select_forward.1} parent=0 // loop_body
    %s31 = ssub.s32 %s26, 1
    %s32 = ssub.s32 %s26, 2
    %s39 = sadd.s32 1, %s34
    %p40 = scmp.ge.s32.totalorder %s39, 1
    %s41 = scalar_select %p40, 0, %s39
    %s42 = sadd.s32 1, %s33
    %s43 = scalar_select %p40, %s42, %s33
    %p44 = scmp.ge.s32.totalorder %s43, 2
    %s45 = scalar_select %p44, 0, %s43
    %s46 = ssub.s32 %s33, %s45
    %p47 = scmp.eq.s32.totalorder %s46, 0
    %s49 = sadd.s32 %s48, 1
    %s50 = scalar_select %p47, %s48, %s49
    %p53 = pneg %p47
    %p54 = scmp.eq.s32.totalorder %s26, 1
    %p55 = por %p53, %p54
    %p56 = scmp.ne.s32.totalorder %s48, %s51
    %p57 = scmp.eq.s32.totalorder %s26, 0
    %p58 = por %p56, %p57
    %p59 = scmp.ne.s32.totalorder %s48, %s51
    %p60 = scmp.eq.s32.totalorder %s31, 1
    %p61 = por %p59, %p60
    %p62 = scmp.ne.s32.totalorder %s51, %s52
    %p63 = scmp.eq.s32.totalorder %s31, 0
    %p64 = por %p62, %p63
    %p65 = scmp.ne.s32.totalorder %s51, %s52
    %p66 = scmp.eq.s32.totalorder %s32, 1
    %p67 = por %p65, %p66
    %p69 = scmp.ne.s32.totalorder %s52, %s68
    %p70 = scmp.eq.s32.totalorder %s32, 0
    %p71 = por %p69, %p70
    %s72 = ssub.s32 %s33, %s45
    %s73 = ssub.s32 %s34, %s41
    %s74 = sor.u32 %s72, %s73
    %p75 = scmp.eq.s32.totalorder %s74, 0
    %s77 = sadd.s32 %s76, 1
    %s78 = scalar_select %p75, %s76, %s77
    %p81 = pneg %p75
    %p82 = scmp.eq.s32.totalorder %s26, 1
    %p83 = por %p81, %p82
    %p84 = scmp.ne.s32.totalorder %s76, %s79
    %p85 = scmp.eq.s32.totalorder %s26, 0
    %p86 = por %p84, %p85
    %p87 = scmp.ne.s32.totalorder %s76, %s79
    %p88 = scmp.eq.s32.totalorder %s31, 1
    %p89 = por %p87, %p88
    %p90 = scmp.ne.s32.totalorder %s79, %s80
    %p91 = scmp.eq.s32.totalorder %s31, 0
    %p92 = por %p90, %p91
    %p93 = scmp.ne.s32.totalorder %s79, %s80
    %p94 = scmp.eq.s32.totalorder %s32, 1
    %p95 = por %p93, %p94
    %p97 = scmp.ne.s32.totalorder %s80, %s96
    %p98 = scmp.eq.s32.totalorder %s32, 0
    %p99 = por %p97, %p98
    %s100 = ssub.s32 %s34, %s41
    %p101 = scmp.eq.s32.totalorder %s100, 0
    %s103 = sadd.s32 %s102, 1
    %s104 = scalar_select %p101, %s102, %s103
    %p107 = pneg %p101
    %p108 = scmp.eq.s32.totalorder %s26, 1
    %p109 = por %p107, %p108
    %p110 = scmp.ne.s32.totalorder %s102, %s105
    %p111 = scmp.eq.s32.totalorder %s26, 0
    %p112 = por %p110, %p111
    %p113 = scmp.ne.s32.totalorder %s102, %s105
    %p114 = scmp.eq.s32.totalorder %s31, 1
    %p115 = por %p113, %p114
    %p116 = scmp.ne.s32.totalorder %s105, %s106
    %p117 = scmp.eq.s32.totalorder %s31, 0
    %p118 = por %p116, %p117
    %p119 = scmp.ne.s32.totalorder %s105, %s106
    %p120 = scmp.eq.s32.totalorder %s32, 1
    %p121 = por %p119, %p120
    %p123 = scmp.ne.s32.totalorder %s106, %s122
    %p124 = scmp.eq.s32.totalorder %s32, 0
    %p125 = por %p123, %p124
    %s126 = ssub.s32 %s34, %s41
    %p127 = scmp.eq.s32.totalorder %s126, 0
    %s129 = sadd.s32 %s128, 1
    %s130 = scalar_select %p127, %s128, %s129
    %p133 = pneg %p127
    %p134 = scmp.eq.s32.totalorder %s26, 1
    %p135 = por %p133, %p134
    %p136 = scmp.ne.s32.totalorder %s128, %s131
    %p137 = scmp.eq.s32.totalorder %s26, 0
    %p138 = por %p136, %p137
    %p139 = scmp.ne.s32.totalorder %s128, %s131
    %p140 = scmp.eq.s32.totalorder %s31, 1
    %p141 = por %p139, %p140
    %p142 = scmp.ne.s32.totalorder %s131, %s132
    %p143 = scmp.eq.s32.totalorder %s31, 0
    %p144 = por %p142, %p143
    %p145 = scmp.ne.s32.totalorder %s131, %s132
    %p146 = scmp.eq.s32.totalorder %s32, 1
    %p147 = por %p145, %p146
    %p149 = scmp.ne.s32.totalorder %s132, %s148
    %p150 = scmp.eq.s32.totalorder %s32, 0
    %p151 = por %p149, %p150
    %s152 = sld [smem:[#allocation4 + %s33]]
    %s153 = sld [smem:[#allocation4 + %s45]]
    %s154 = ssub.s32 %s152, %s153
    %p155 = scmp.eq.s32.totalorder %s154, 0
    %s157 = sadd.s32 %s156, 1
    %s158 = scalar_select %p155, %s156, %s157
    %p161 = pneg %p155
    %p162 = scmp.eq.s32.totalorder %s26, 1
    %p163 = por %p161, %p162
    %p164 = scmp.ne.s32.totalorder %s156, %s159
    %p165 = scmp.eq.s32.totalorder %s26, 0
    %p166 = por %p164, %p165
    %p167 = scmp.ne.s32.totalorder %s156, %s159
    %p168 = scmp.eq.s32.totalorder %s31, 1
    %p169 = por %p167, %p168
    %p170 = scmp.ne.s32.totalorder %s159, %s160
    %p171 = scmp.eq.s32.totalorder %s31, 0
    %p172 = por %p170, %p171
    %p173 = scmp.ne.s32.totalorder %s159, %s160
    %p174 = scmp.eq.s32.totalorder %s32, 1
    %p175 = por %p173, %p174
    %p177 = scmp.ne.s32.totalorder %s160, %s176
    %p178 = scmp.eq.s32.totalorder %s32, 0
    %p179 = por %p177, %p178
    %s180 = sld [smem:[#allocation4 + %s33]]
    %s181 = sld [smem:[#allocation4 + %s45]]
    %s182 = ssub.s32 %s180, %s181
    %p183 = scmp.eq.s32.totalorder %s182, 0
    %s185 = sadd.s32 %s184, 1
    %s186 = scalar_select %p183, %s184, %s185
    %p189 = pneg %p183
    %p190 = scmp.eq.s32.totalorder %s26, 1
    %p191 = por %p189, %p190
    %p192 = scmp.ne.s32.totalorder %s184, %s187
    %p193 = scmp.eq.s32.totalorder %s26, 0
    %p194 = por %p192, %p193
    %p195 = scmp.ne.s32.totalorder %s184, %s187
    %p196 = scmp.eq.s32.totalorder %s31, 1
    %p197 = por %p195, %p196
    %p198 = scmp.ne.s32.totalorder %s187, %s188
    %p199 = scmp.eq.s32.totalorder %s31, 0
    %p200 = por %p198, %p199
    %p201 = scmp.ne.s32.totalorder %s187, %s188
    %p202 = scmp.eq.s32.totalorder %s32, 1
    %p203 = por %p201, %p202
    %p205 = scmp.ne.s32.totalorder %s188, %s204
    %p206 = scmp.eq.s32.totalorder %s32, 0
    %p207 = por %p205, %p206
    %s208 = sld [smem:[#allocation4 + %s33]]
    %s209 = sld [smem:[#allocation4 + %s45]]
    %s210 = ssub.s32 %s208, %s209
    %p211 = scmp.eq.s32.totalorder %s210, 0
    %s213 = sadd.s32 %s212, 1
    %s214 = scalar_select %p211, %s212, %s213
    %p217 = pneg %p211
    %p218 = scmp.eq.s32.totalorder %s26, 1
    %p219 = por %p217, %p218
    %p220 = scmp.ne.s32.totalorder %s212, %s215
    %p221 = scmp.eq.s32.totalorder %s26, 0
    %p222 = por %p220, %p221
    %p223 = scmp.ne.s32.totalorder %s212, %s215
    %p224 = scmp.eq.s32.totalorder %s31, 1
    %p225 = por %p223, %p224
    %p226 = scmp.ne.s32.totalorder %s215, %s216
    %p227 = scmp.eq.s32.totalorder %s31, 0
    %p228 = por %p226, %p227
    %p229 = scmp.ne.s32.totalorder %s215, %s216
    %p230 = scmp.eq.s32.totalorder %s32, 1
    %p231 = por %p229, %p230
    %p233 = scmp.ne.s32.totalorder %s216, %s232
    %p234 = scmp.eq.s32.totalorder %s32, 0
    %p235 = por %p233, %p234
    %s236 = sld [smem:[#allocation4 + %s33]]
    %s237 = sld [smem:[#allocation4 + %s45]]
    %s238 = ssub.s32 %s236, %s237
    %p239 = scmp.eq.s32.totalorder %s238, 0
    %s241 = sadd.s32 %s240, 1
    %s242 = scalar_select %p239, %s240, %s241
    %p245 = pneg %p239
    %p246 = scmp.eq.s32.totalorder %s26, 1
    %p247 = por %p245, %p246
    %p248 = scmp.ne.s32.totalorder %s240, %s243
    %p249 = scmp.eq.s32.totalorder %s26, 0
    %p250 = por %p248, %p249
    %p251 = scmp.ne.s32.totalorder %s240, %s243
    %p252 = scmp.eq.s32.totalorder %s31, 1
    %p253 = por %p251, %p252
    %p254 = scmp.ne.s32.totalorder %s243, %s244
    %p255 = scmp.eq.s32.totalorder %s31, 0
    %p256 = por %p254, %p255
    %p257 = scmp.ne.s32.totalorder %s243, %s244
    %p258 = scmp.eq.s32.totalorder %s32, 1
    %p259 = por %p257, %p258
    %p261 = scmp.ne.s32.totalorder %s244, %s260
    %p262 = scmp.eq.s32.totalorder %s32, 0
    %p263 = por %p261, %p262
    %s264 = sld [smem:[#allocation4 + %s33]]
    %s265 = sld [smem:[#allocation4 + %s45]]
    %s266 = ssub.s32 %s264, %s265
    %p267 = scmp.eq.s32.totalorder %s266, 0
    %s269 = sadd.s32 %s268, 1
    %s270 = scalar_select %p267, %s268, %s269
    %p273 = pneg %p267
    %p274 = scmp.eq.s32.totalorder %s26, 1
    %p275 = por %p273, %p274
    %p276 = scmp.ne.s32.totalorder %s268, %s271
    %p277 = scmp.eq.s32.totalorder %s26, 0
    %p278 = por %p276, %p277
    %p279 = scmp.ne.s32.totalorder %s268, %s271
    %p280 = scmp.eq.s32.totalorder %s31, 1
    %p281 = por %p279, %p280
    %p282 = scmp.ne.s32.totalorder %s271, %s272
    %p283 = scmp.eq.s32.totalorder %s31, 0
    %p284 = por %p282, %p283
    %p285 = scmp.ne.s32.totalorder %s271, %s272
    %p286 = scmp.eq.s32.totalorder %s32, 1
    %p287 = por %p285, %p286
    %p289 = scmp.ne.s32.totalorder %s272, %s288
    %p290 = scmp.eq.s32.totalorder %s32, 0
    %p291 = por %p289, %p290
    %s292 = sld [smem:[#allocation4 + %s33]]
    %s293 = sld [smem:[#allocation4 + %s45]]
    %s294 = ssub.s32 %s292, %s293
    %p295 = scmp.eq.s32.totalorder %s294, 0
    %s297 = sadd.s32 %s296, 1
    %s298 = scalar_select %p295, %s296, %s297
    %p301 = pneg %p295
    %p302 = scmp.eq.s32.totalorder %s26, 1
    %p303 = por %p301, %p302
    %p304 = scmp.ne.s32.totalorder %s296, %s299
    %p305 = scmp.eq.s32.totalorder %s26, 0
    %p306 = por %p304, %p305
    %p307 = scmp.ne.s32.totalorder %s296, %s299
    %p308 = scmp.eq.s32.totalorder %s31, 1
    %p309 = por %p307, %p308
    %p310 = scmp.ne.s32.totalorder %s299, %s300
    %p311 = scmp.eq.s32.totalorder %s31, 0
    %p312 = por %p310, %p311
    %p313 = scmp.ne.s32.totalorder %s299, %s300
    %p314 = scmp.eq.s32.totalorder %s32, 1
    %p315 = por %p313, %p314
    %p317 = scmp.ne.s32.totalorder %s300, %s316
    %p318 = scmp.eq.s32.totalorder %s32, 0
    %p319 = por %p317, %p318
    %s320 = sld [smem:[#allocation4 + %s33]]
    %s321 = sld [smem:[#allocation4 + %s45]]
    %s322 = ssub.s32 %s320, %s321
    %p323 = scmp.eq.s32.totalorder %s322, 0
    %s325 = sadd.s32 %s324, 1
    %s326 = scalar_select %p323, %s324, %s325
    %p329 = pneg %p323
    %p330 = scmp.eq.s32.totalorder %s26, 1
    %p331 = por %p329, %p330
    %p332 = scmp.ne.s32.totalorder %s324, %s327
    %p333 = scmp.eq.s32.totalorder %s26, 0
    %p334 = por %p332, %p333
    %p335 = scmp.ne.s32.totalorder %s324, %s327
    %p336 = scmp.eq.s32.totalorder %s31, 1
    %p337 = por %p335, %p336
    %p338 = scmp.ne.s32.totalorder %s327, %s328
    %p339 = scmp.eq.s32.totalorder %s31, 0
    %p340 = por %p338, %p339
    %p341 = scmp.ne.s32.totalorder %s327, %s328
    %p342 = scmp.eq.s32.totalorder %s32, 1
    %p343 = por %p341, %p342
    %p345 = scmp.ne.s32.totalorder %s328, %s344
    %p346 = scmp.eq.s32.totalorder %s32, 0
    %p347 = por %p345, %p346
    %s348 = sld [smem:[#allocation4 + %s33]]
    %s349 = sld [smem:[#allocation4 + %s45]]
    %s350 = ssub.s32 %s348, %s349
    %p351 = scmp.eq.s32.totalorder %s350, 0
    %s353 = sadd.s32 %s352, 1
    %s354 = scalar_select %p351, %s352, %s353
    %p357 = pneg %p351
    %p358 = scmp.eq.s32.totalorder %s26, 1
    %p359 = por %p357, %p358
    %p360 = scmp.ne.s32.totalorder %s352, %s355
    %p361 = scmp.eq.s32.totalorder %s26, 0
    %p362 = por %p360, %p361
    %p363 = scmp.ne.s32.totalorder %s352, %s355
    %p364 = scmp.eq.s32.totalorder %s31, 1
    %p365 = por %p363, %p364
    %p366 = scmp.ne.s32.totalorder %s355, %s356
    %p367 = scmp.eq.s32.totalorder %s31, 0
    %p368 = por %p366, %p367
    %p369 = scmp.ne.s32.totalorder %s355, %s356
    %p370 = scmp.eq.s32.totalorder %s32, 1
    %p371 = por %p369, %p370
    %p373 = scmp.ne.s32.totalorder %s356, %s372
    %p374 = scmp.eq.s32.totalorder %s32, 0
    %p375 = por %p373, %p374
    %s376 = sld [smem:[#allocation4 + %s33]]
    %s377 = sld [smem:[#allocation4 + %s45]]
    %s378 = ssub.s32 %s376, %s377
    %p379 = scmp.eq.s32.totalorder %s378, 0
    %s381 = sadd.s32 %s380, 1
    %s382 = scalar_select %p379, %s380, %s381
    %p385 = pneg %p379
    %p386 = scmp.eq.s32.totalorder %s26, 1
    %p387 = por %p385, %p386
    %p388 = scmp.ne.s32.totalorder %s380, %s383
    %p389 = scmp.eq.s32.totalorder %s26, 0
    %p390 = por %p388, %p389
    %p391 = scmp.ne.s32.totalorder %s380, %s383
    %p392 = scmp.eq.s32.totalorder %s31, 1
    %p393 = por %p391, %p392
    %p394 = scmp.ne.s32.totalorder %s383, %s384
    %p395 = scmp.eq.s32.totalorder %s31, 0
    %p396 = por %p394, %p395
    %p397 = scmp.ne.s32.totalorder %s383, %s384
    %p398 = scmp.eq.s32.totalorder %s32, 1
    %p399 = por %p397, %p398
    %p401 = scmp.ne.s32.totalorder %s384, %s400
    %p402 = scmp.eq.s32.totalorder %s32, 0
    %p403 = por %p401, %p402
    %s404 = ssub.s32 %s33, %s45
    %s405 = ssub.s32 %s34, %s41
    %s406 = sor.u32 %s404, %s405
    %p407 = scmp.eq.s32.totalorder %s406, 0
    %s409 = sadd.s32 %s408, 1
    %s410 = scalar_select %p407, %s408, %s409
    %p413 = pneg %p407
    %p414 = scmp.eq.s32.totalorder %s26, 1
    %p415 = por %p413, %p414
    %p416 = scmp.ne.s32.totalorder %s408, %s411
    %p417 = scmp.eq.s32.totalorder %s26, 0
    %p418 = por %p416, %p417
    %p419 = scmp.ne.s32.totalorder %s408, %s411
    %p420 = scmp.eq.s32.totalorder %s31, 1
    %p421 = por %p419, %p420
    %p422 = scmp.ne.s32.totalorder %s411, %s412
    %p423 = scmp.eq.s32.totalorder %s31, 0
    %p424 = por %p422, %p423
    %p425 = scmp.ne.s32.totalorder %s411, %s412
    %p426 = scmp.eq.s32.totalorder %s32, 1
    %p427 = por %p425, %p426
    %p429 = scmp.ne.s32.totalorder %s412, %s428
    %p430 = scmp.eq.s32.totalorder %s32, 0
    %p431 = por %p429, %p430
    %p432 = scmp.le.s32.totalorder 1, %s26
    %p433 = scmp.lt.s32.totalorder %s26, 3
    %p434 = pnand %p432, %p433
    %p435 = pneg %p434
    // Predicated region
    $region9: #{decoder_select_forward.1} parent=5 // pred_check
      _
    $region10: #{decoder_select_forward.1} parent=5 // pred_check_branch
      %437 = sbr.rel (%p434) target = $region12
    $region11: #{decoder_select_forward.1} parent=5 // pred_region
      %s438 = ssub.s32 %s26, 1
      // Predicated region
      $region13: #{decoder_select_forward.1} parent=11 // pred_check
        %p439 = pneg %p118
      $region14: #{decoder_select_forward.1} parent=11 // pred_check_branch
        %441 = sbr.rel (%p439) target = $region16
      $region15: #{decoder_select_forward.1} parent=11 // pred_region
        %p442 = scmp.lt.s32.totalorder %s36, 0
        %s443 = scalar_select %p442, %s36, 0
        %s444 = smul.addr %s443, 4
        %s445 = scalar_lea.vmem %s3, %s444
      $region16: #{decoder_select_forward.1} parent=11 // pred_fallthru
        _
      // Predicated region
      $region17: #{decoder_select_forward.1} parent=11 // pred_check
        %p446 = pneg %p144
      $region18: #{decoder_select_forward.1} parent=11 // pred_check_branch
        %448 = sbr.rel (%p446) target = $region20
      $region19: #{decoder_select_forward.1} parent=11 // pred_region
        %p449 = scmp.lt.s32.totalorder %s36, 0
        %s450 = scalar_select %p449, %s36, 0
        %s451 = scalar_lea.vmem %s4, %s450
      $region20: #{decoder_select_forward.1} parent=11 // pred_fallthru
        _
    $region12: #{decoder_select_forward.1} parent=5 // pred_fallthru
      _
    %p452 = scmp.lt.s32.totalorder %s26, 2
    // Predicated region
    $region21: #{decoder_select_forward.1} parent=5 // pred_check
      %p453 = pneg %p452
    $region22: #{decoder_select_forward.1} parent=5 // pred_check_branch
      %455 = sbr.rel (%p453) target = $region24
    $region23: #{decoder_select_forward.1} parent=5 // pred_region
      // Predicated region
      $region25: #{decoder_select_forward.1} parent=23 // pred_check
        %p456 = pneg %p58
      $region26: #{decoder_select_forward.1} parent=23 // pred_check_branch
        %458 = sbr.rel (%p456) target = $region28
      $region27: #{decoder_select_forward.1} parent=23 // pred_region
        %p459 = scmp.lt.s32.totalorder %s33, 1
        %s460 = scalar_select %p459, %s33, 1
        %s461 = smul.addr %s460, 12
        %s462 = smul.addr %s461, 4
        %s463 = scalar_lea.vmem %s1, %s462
      $region28: #{decoder_select_forward.1} parent=23 // pred_fallthru
        _
      // Predicated region
      $region29: #{decoder_select_forward.1} parent=23 // pred_check
        %p464 = pneg %p86
      $region30: #{decoder_select_forward.1} parent=23 // pred_check_branch
        %466 = sbr.rel (%p464) target = $region32
      $region31: #{decoder_select_forward.1} parent=23 // pred_region
        %p467 = scmp.lt.s32.totalorder %s33, 1
        %s468 = scalar_select %p467, %s33, 1
        %p469 = scmp.lt.s32.totalorder %s34, 0
        %s470 = scalar_select %p469, %s34, 0
        %s471 = smul.addr %s468, 8
        %s472 = sadd.s32 %s470, %s471
        %s473 = smul.addr %s472, 8
        %s474 = scalar_lea.vmem %s2, %s473
      $region32: #{decoder_select_forward.1} parent=23 // pred_fallthru
        _
      // Predicated region
      $region33: #{decoder_select_forward.1} parent=23 // pred_check
        %p475 = pneg %p166
      $region34: #{decoder_select_forward.1} parent=23 // pred_check_branch
        %477 = sbr.rel (%p475) target = $region36
      $region35: #{decoder_select_forward.1} parent=23 // pred_region
        %s478 = sld [smem:[#allocation4 + %s33]]
        %p479 = scmp.lt.s32.totalorder %s478, 1
        %s480 = scalar_select %p479, %s478, 1
        %s481 = scalar_lea.vmem %s5, %s480
        %s482 = sld [smem:[#allocation4 + %s33]]
      $region36: #{decoder_select_forward.1} parent=23 // pred_fallthru
        _
      // Predicated region
      $region37: #{decoder_select_forward.1} parent=23 // pred_check
        %p483 = pneg %p194
      $region38: #{decoder_select_forward.1} parent=23 // pred_check_branch
        %485 = sbr.rel (%p483) target = $region40
      $region39: #{decoder_select_forward.1} parent=23 // pred_region
        %s486 = sld [smem:[#allocation4 + %s33]]
        %p487 = scmp.lt.s32.totalorder %s486, 1
        %s488 = scalar_select %p487, %s486, 1
        %s489 = smul.addr %s488, 12
        %s490 = smul.addr %s489, 4
        %s491 = scalar_lea.vmem %s6, %s490
        %s492 = sld [smem:[#allocation4 + %s33]]
      $region40: #{decoder_select_forward.1} parent=23 // pred_fallthru
        _
      // Predicated region
      $region41: #{decoder_select_forward.1} parent=23 // pred_check
        %p493 = pneg %p222
      $region42: #{decoder_select_forward.1} parent=23 // pred_check_branch
        %495 = sbr.rel (%p493) target = $region44
      $region43: #{decoder_select_forward.1} parent=23 // pred_region
        %s496 = sld [smem:[#allocation4 + %s33]]
        %p497 = scmp.lt.s32.totalorder %s496, 1
        %s498 = scalar_select %p497, %s496, 1
        %s499 = smul.addr %s498, 12
        %s500 = smul.addr %s499, 8
        %s501 = scalar_lea.vmem %s7, %s500
        %s502 = sld [smem:[#allocation4 + %s33]]
      $region44: #{decoder_select_forward.1} parent=23 // pred_fallthru
        _
      // Predicated region
      $region45: #{decoder_select_forward.1} parent=23 // pred_check
        %p503 = pneg %p250
      $region46: #{decoder_select_forward.1} parent=23 // pred_check_branch
        %505 = sbr.rel (%p503) target = $region48
      $region47: #{decoder_select_forward.1} parent=23 // pred_region
        %s506 = sld [smem:[#allocation4 + %s33]]
        %p507 = scmp.lt.s32.totalorder %s506, 1
        %s508 = scalar_select %p507, %s506, 1
        %s509 = smul.addr %s508, 4
        %s510 = smul.addr %s509, 4
        %s511 = scalar_lea.vmem %s8, %s510
        %s512 = sld [smem:[#allocation4 + %s33]]
      $region48: #{decoder_select_forward.1} parent=23 // pred_fallthru
        _
      // Predicated region
      $region49: #{decoder_select_forward.1} parent=23 // pred_check
        %p513 = pneg %p278
      $region50: #{decoder_select_forward.1} parent=23 // pred_check_branch
        %515 = sbr.rel (%p513) target = $region52
      $region51: #{decoder_select_forward.1} parent=23 // pred_region
        %s516 = sld [smem:[#allocation4 + %s33]]
        %p517 = scmp.lt.s32.totalorder %s516, 1
        %s518 = scalar_select %p517, %s516, 1
        %s519 = smul.addr %s518, 4
        %s520 = smul.addr %s519, 8
        %s521 = scalar_lea.vmem %s9, %s520
        %s522 = sld [smem:[#allocation4 + %s33]]
      $region52: #{decoder_select_forward.1} parent=23 // pred_fallthru
        _
      // Predicated region
      $region53: #{decoder_select_forward.1} parent=23 // pred_check
        %p523 = pneg %p306
      $region54: #{decoder_select_forward.1} parent=23 // pred_check_branch
        %525 = sbr.rel (%p523) target = $region56
      $region55: #{decoder_select_forward.1} parent=23 // pred_region
        %s526 = sld [smem:[#allocation4 + %s33]]
        %p527 = scmp.lt.s32.totalorder %s526, 1
        %s528 = scalar_select %p527, %s526, 1
        %s529 = smul.addr %s528, 4
        %s530 = smul.addr %s529, 4
        %s531 = scalar_lea.vmem %s10, %s530
        %s532 = sld [smem:[#allocation4 + %s33]]
      $region56: #{decoder_select_forward.1} parent=23 // pred_fallthru
        _
      // Predicated region
      $region57: #{decoder_select_forward.1} parent=23 // pred_check
        %p533 = pneg %p334
      $region58: #{decoder_select_forward.1} parent=23 // pred_check_branch
        %535 = sbr.rel (%p533) target = $region60
      $region59: #{decoder_select_forward.1} parent=23 // pred_region
        %s536 = sld [smem:[#allocation4 + %s33]]
        %p537 = scmp.lt.s32.totalorder %s536, 1
        %s538 = scalar_select %p537, %s536, 1
        %s539 = smul.addr %s538, 4
        %s540 = smul.addr %s539, 8
        %s541 = scalar_lea.vmem %s11, %s540
        %s542 = sld [smem:[#allocation4 + %s33]]
      $region60: #{decoder_select_forward.1} parent=23 // pred_fallthru
        _
      // Predicated region
      $region61: #{decoder_select_forward.1} parent=23 // pred_check
        %p543 = pneg %p362
      $region62: #{decoder_select_forward.1} parent=23 // pred_check_branch
        %545 = sbr.rel (%p543) target = $region64
      $region63: #{decoder_select_forward.1} parent=23 // pred_region
        %s546 = sld [smem:[#allocation4 + %s33]]
        %p547 = scmp.lt.s32.totalorder %s546, 1
        %s548 = scalar_select %p547, %s546, 1
        %s549 = smul.addr %s548, 8
        %s550 = smul.addr %s549, 4
        %s551 = scalar_lea.vmem %s12, %s550
        %s552 = sld [smem:[#allocation4 + %s33]]
      $region64: #{decoder_select_forward.1} parent=23 // pred_fallthru
        _
      // Predicated region
      $region65: #{decoder_select_forward.1} parent=23 // pred_check
        %p553 = pneg %p390
      $region66: #{decoder_select_forward.1} parent=23 // pred_check_branch
        %555 = sbr.rel (%p553) target = $region68
      $region67: #{decoder_select_forward.1} parent=23 // pred_region
        %s556 = sld [smem:[#allocation4 + %s33]]
        %p557 = scmp.lt.s32.totalorder %s556, 1
        %s558 = scalar_select %p557, %s556, 1
        %s559 = smul.addr %s558, 2
        %s560 = smul.addr %s559, 4
        %s561 = scalar_lea.vmem %s13, %s560
        %s562 = sld [smem:[#allocation4 + %s33]]
      $region68: #{decoder_select_forward.1} parent=23 // pred_fallthru
        _
    $region24: #{decoder_select_forward.1} parent=5 // pred_fallthru
      _
    %p563 = scmp.le.s32.totalorder 1, %s26
    %p564 = scmp.lt.s32.totalorder %s26, 3
    %p565 = pnand %p563, %p564
    %p566 = pneg %p565
    // Predicated region
    $region69: #{decoder_select_forward.1} parent=5 // pred_check
      _
    $region70: #{decoder_select_forward.1} parent=5 // pred_check_branch
      %568 = sbr.rel (%p565) target = $region72
    $region71: #{decoder_select_forward.1} parent=5 // pred_region
      %s569 = ssub.s32 %s26, 1
      %p570 = scmp.lt.s32.totalorder %s35, 1
      %s571 = scalar_select %p570, %s35, 1
      %s572 = smul.addr %s571, 12
      %s573 = smul.addr %s572, 4
      %s574 = scalar_lea.vmem %s1, %s573
      %p575 = pneg %p64
      %p576 = pneg %p61
      %p577 = scmp.lt.s32.totalorder %s35, 1
      %s578 = scalar_select %p577, %s35, 1
      %p579 = scmp.lt.s32.totalorder %s36, 0
      %s580 = scalar_select %p579, %s36, 0
      %s581 = smul.addr %s578, 8
      %s582 = sadd.s32 %s580, %s581
      %s583 = smul.addr %s582, 8
      %s584 = scalar_lea.vmem %s2, %s583
      %p585 = pneg %p92
      %p586 = pneg %p89
      %p587 = scmp.lt.s32.totalorder %s36, 0
      %s588 = scalar_select %p587, %s36, 0
      %s589 = smul.addr %s588, 4
      %s590 = scalar_lea.vmem %s3, %s589
      %p591 = pneg %p118
      %p592 = pneg %p115
      %p593 = scmp.lt.s32.totalorder %s36, 0
      %s594 = scalar_select %p593, %s36, 0
      %s595 = scalar_lea.vmem %s4, %s594
      %p596 = pneg %p144
      %p597 = pneg %p141
      %s598 = sld [smem:[#allocation4 + %s35]]
      %p599 = scmp.lt.s32.totalorder %s598, 1
      %s600 = scalar_select %p599, %s598, 1
      %s601 = scalar_lea.vmem %s5, %s600
      %p602 = pneg %p172
      %p603 = pneg %p169
      %s604 = sld [smem:[#allocation4 + %s35]]
      %p605 = scmp.lt.s32.totalorder %s604, 1
      %s606 = scalar_select %p605, %s604, 1
      %s607 = smul.addr %s606, 12
      %s608 = smul.addr %s607, 4
      %s609 = scalar_lea.vmem %s6, %s608
      %p610 = pneg %p200
      %p611 = pneg %p197
      %s612 = sld [smem:[#allocation4 + %s35]]
      %p613 = scmp.lt.s32.totalorder %s612, 1
      %s614 = scalar_select %p613, %s612, 1
      %s615 = smul.addr %s614, 12
      %s616 = smul.addr %s615, 8
      %s617 = scalar_lea.vmem %s7, %s616
      %p618 = pneg %p228
      %p619 = pneg %p225
      %s620 = sld [smem:[#allocation4 + %s35]]
      %p621 = scmp.lt.s32.totalorder %s620, 1
      %s622 = scalar_select %p621, %s620, 1
      %s623 = smul.addr %s622, 4
      %s624 = smul.addr %s623, 4
      %s625 = scalar_lea.vmem %s8, %s624
      %p626 = pneg %p256
      %p627 = pneg %p253
      %s628 = sld [smem:[#allocation4 + %s35]]
      %p629 = scmp.lt.s32.totalorder %s628, 1
      %s630 = scalar_select %p629, %s628, 1
      %s631 = smul.addr %s630, 4
      %s632 = smul.addr %s631, 8
      %s633 = scalar_lea.vmem %s9, %s632
      %p634 = pneg %p284
      %p635 = pneg %p281
      %s636 = sld [smem:[#allocation4 + %s35]]
      %p637 = scmp.lt.s32.totalorder %s636, 1
      %s638 = scalar_select %p637, %s636, 1
      %s639 = smul.addr %s638, 4
      %s640 = smul.addr %s639, 4
      %s641 = scalar_lea.vmem %s10, %s640
      %p642 = pneg %p312
      %p643 = pneg %p309
      %s644 = sld [smem:[#allocation4 + %s35]]
      %p645 = scmp.lt.s32.totalorder %s644, 1
      %s646 = scalar_select %p645, %s644, 1
      %s647 = smul.addr %s646, 4
      %s648 = smul.addr %s647, 8
      %s649 = scalar_lea.vmem %s11, %s648
      %p650 = pneg %p340
      %p651 = pneg %p337
      %s652 = sld [smem:[#allocation4 + %s35]]
      %p653 = scmp.lt.s32.totalorder %s652, 1
      %s654 = scalar_select %p653, %s652, 1
      %s655 = smul.addr %s654, 8
      %s656 = smul.addr %s655, 4
      %s657 = scalar_lea.vmem %s12, %s656
      %p658 = pneg %p368
      %p659 = pneg %p365
      %s660 = sld [smem:[#allocation4 + %s35]]
      %p661 = scmp.lt.s32.totalorder %s660, 1
      %s662 = scalar_select %p661, %s660, 1
      %s663 = smul.addr %s662, 2
      %s664 = smul.addr %s663, 4
      %s665 = scalar_lea.vmem %s13, %s664
      %p666 = pneg %p396
      %p667 = pneg %p393
      %p668 = pneg %p424
      %p669 = pneg %p421
      %p670 = scmp.lt.s32.totalorder %s35, 1
      %s671 = scalar_select %p670, %s35, 1
      %p672 = scmp.lt.s32.totalorder %s36, 0
      %s673 = scalar_select %p672, %s36, 0
      %s674 = smul.addr %s671, 6
      %s675 = sadd.s32 %s673, %s674
      %s676 = smul.addr %s675, 8
      %s677 = scalar_lea.vmem %s14, %s676
      %p678 = scmp.lt.s32.totalorder %s35, 1
      %s679 = scalar_select %p678, %s35, 1
      %s680 = smul.addr %s679, 12
      %s681 = smul.addr %s680, 4
      %s682 = scalar_lea.vmem %s1, %s681
      %p683 = scmp.lt.s32.totalorder %s35, 1
      %s684 = scalar_select %p683, %s35, 1
      %p685 = scmp.lt.s32.totalorder %s36, 0
      %s686 = scalar_select %p685, %s36, 0
      %s687 = smul.addr %s684, 8
      %s688 = sadd.s32 %s686, %s687
      %s689 = smul.addr %s688, 8
      %s690 = scalar_lea.vmem %s2, %s689
      %p691 = scmp.lt.s32.totalorder %s36, 0
      %s692 = scalar_select %p691, %s36, 0
      %s693 = smul.addr %s692, 4
      %s694 = scalar_lea.vmem %s3, %s693
      %p695 = scmp.lt.s32.totalorder %s36, 0
      %s696 = scalar_select %p695, %s36, 0
      %s697 = scalar_lea.vmem %s4, %s696
      %s698 = sld [smem:[#allocation4 + %s35]]
      %p699 = scmp.lt.s32.totalorder %s698, 1
      %s700 = scalar_select %p699, %s698, 1
      %s701 = scalar_lea.vmem %s5, %s700
      %s702 = sld [smem:[#allocation4 + %s35]]
      %s703 = sld [smem:[#allocation4 + %s35]]
      %p704 = scmp.lt.s32.totalorder %s703, 1
      %s705 = scalar_select %p704, %s703, 1
      %s706 = smul.addr %s705, 12
      %s707 = smul.addr %s706, 4
      %s708 = scalar_lea.vmem %s6, %s707
      %s709 = sld [smem:[#allocation4 + %s35]]
      %s710 = sld [smem:[#allocation4 + %s35]]
      %p711 = scmp.lt.s32.totalorder %s710, 1
      %s712 = scalar_select %p711, %s710, 1
      %s713 = smul.addr %s712, 12
      %s714 = smul.addr %s713, 8
      %s715 = scalar_lea.vmem %s7, %s714
      %s716 = sld [smem:[#allocation4 + %s35]]
      %s717 = sld [smem:[#allocation4 + %s35]]
      %p718 = scmp.lt.s32.totalorder %s717, 1
      %s719 = scalar_select %p718, %s717, 1
      %s720 = smul.addr %s719, 4
      %s721 = smul.addr %s720, 4
      %s722 = scalar_lea.vmem %s8, %s721
      %s723 = sld [smem:[#allocation4 + %s35]]
      %s724 = sld [smem:[#allocation4 + %s35]]
      %p725 = scmp.lt.s32.totalorder %s724, 1
      %s726 = scalar_select %p725, %s724, 1
      %s727 = smul.addr %s726, 4
      %s728 = smul.addr %s727, 8
      %s729 = scalar_lea.vmem %s9, %s728
      %s730 = sld [smem:[#allocation4 + %s35]]
      %s731 = sld [smem:[#allocation4 + %s35]]
      %p732 = scmp.lt.s32.totalorder %s731, 1
      %s733 = scalar_select %p732, %s731, 1
      %s734 = smul.addr %s733, 4
      %s735 = smul.addr %s734, 4
      %s736 = scalar_lea.vmem %s10, %s735
      %s737 = sld [smem:[#allocation4 + %s35]]
      %s738 = sld [smem:[#allocation4 + %s35]]
      %p739 = scmp.lt.s32.totalorder %s738, 1
      %s740 = scalar_select %p739, %s738, 1
      %s741 = smul.addr %s740, 4
      %s742 = smul.addr %s741, 8
      %s743 = scalar_lea.vmem %s11, %s742
      %s744 = sld [smem:[#allocation4 + %s35]]
      %s745 = sld [smem:[#allocation4 + %s35]]
      %p746 = scmp.lt.s32.totalorder %s745, 1
      %s747 = scalar_select %p746, %s745, 1
      %s748 = smul.addr %s747, 8
      %s749 = smul.addr %s748, 4
      %s750 = scalar_lea.vmem %s12, %s749
      %s751 = sld [smem:[#allocation4 + %s35]]
      %s752 = sld [smem:[#allocation4 + %s35]]
      %p753 = scmp.lt.s32.totalorder %s752, 1
      %s754 = scalar_select %p753, %s752, 1
      %s755 = smul.addr %s754, 2
      %s756 = smul.addr %s755, 4
      %s757 = scalar_lea.vmem %s13, %s756
      %s758 = sld [smem:[#allocation4 + %s35]]
      %p759 = scmp.lt.s32.totalorder %s35, 1
      %s760 = scalar_select %p759, %s35, 1
      %p761 = scmp.lt.s32.totalorder %s36, 0
      %s762 = scalar_select %p761, %s36, 0
      %s763 = smul.addr %s760, 6
      %s764 = sadd.s32 %s762, %s763
      %s765 = smul.addr %s764, 8
      %s766 = scalar_lea.vmem %s14, %s765
      %v768 = vld [vmem:[%s701] sm:$0x1]
      %s769 = vtos %v768
      %v770 = vld [vmem:[%s682] sm:$0xff]
      %v771 = vld [vmem:[%s682 + $0x8] sm:$0xf]
      %v772 = vld [vmem:[%s682 + $0xc] sm:$0xff]
      %v773 = vld [vmem:[%s682 + $0x14] sm:$0xf]
      %v774 = vld [vmem:[%s682 + $0x18] sm:$0xff]
      %v775 = vld [vmem:[%s682 + $0x20] sm:$0xf]
      %v776 = vld [vmem:[%s682 + $0x24] sm:$0xff]
      %v777 = vld [vmem:[%s682 + $0x2c] sm:$0xf]
      %v778 = vunpack.c.l.bf16 %v770
      %v779 = vunpack.c.h.bf16 %v770
      %v780 = vunpack.c.l.bf16 %v771
      %v781 = vunpack.c.l.bf16 %v772
      %v782 = vunpack.c.h.bf16 %v772
      %v783 = vunpack.c.l.bf16 %v773
      %v784 = vunpack.c.l.bf16 %v774
      %v785 = vunpack.c.h.bf16 %v774
      %v786 = vunpack.c.l.bf16 %v775
      %v787 = vunpack.c.l.bf16 %v776
      %v788 = vunpack.c.h.bf16 %v776
      %v789 = vunpack.c.l.bf16 %v777
      %vm790 = vcmp.ge.f32.partialorder %v778, 0.0
      %vm791 = vcmp.ge.f32.partialorder %v779, 0.0
      %vm792 = vcmp.ge.f32.partialorder %v780, 0.0
      %vm793 = vcmp.ge.f32.partialorder %v781, 0.0
      %vm794 = vcmp.ge.f32.partialorder %v782, 0.0
      %vm795 = vcmp.ge.f32.partialorder %v783, 0.0
      %vm796 = vcmp.ge.f32.partialorder %v784, 0.0
      %vm797 = vcmp.ge.f32.partialorder %v785, 0.0
      %vm798 = vcmp.ge.f32.partialorder %v786, 0.0
      %vm799 = vcmp.ge.f32.partialorder %v787, 0.0
      %vm800 = vcmp.ge.f32.partialorder %v788, 0.0
      %vm801 = vcmp.ge.f32.partialorder %v789, 0.0
      %v802 = vstv %s769
      %v803 = vmul.f32 %v802, %v778
      %v804 = vmul.f32 %v802, %v779
      %v805 = vmul.f32 %v802, %v780
      %v806 = vmul.f32 %v802, %v781
      %v807 = vmul.f32 %v802, %v782
      %v808 = vmul.f32 %v802, %v783
      %v809 = vmul.f32 %v802, %v784
      %v810 = vmul.f32 %v802, %v785
      %v811 = vmul.f32 %v802, %v786
      %v812 = vmul.f32 %v802, %v787
      %v813 = vmul.f32 %v802, %v788
      %v814 = vmul.f32 %v802, %v789
      %v815 = vsel %vm790, %v778, %v803
      %v816 = vsel %vm791, %v779, %v804
      %v817 = vsel %vm792, %v780, %v805
      %v818 = vsel %vm793, %v781, %v806
      %v819 = vsel %vm794, %v782, %v807
      %v820 = vsel %vm795, %v783, %v808
      %v821 = vsel %vm796, %v784, %v809
      %v822 = vsel %vm797, %v785, %v810
      %v823 = vsel %vm798, %v786, %v811
      %v824 = vsel %vm799, %v787, %v812
      %v825 = vsel %vm800, %v788, %v813
      %v826 = vsel %vm801, %v789, %v814
      %v827 = vpack.c.bf16 %v818, %v815
      %v828 = vpack.c.bf16 %v819, %v816
      %v829 = vpack.c.bf16 %v820, %v817
      %v830 = vpack.c.bf16 %v824, %v821
      %v831 = vpack.c.bf16 %v825, %v822
      %v832 = vpack.c.bf16 %v826, %v823
      %v833 = vld [vmem:[%s694] sm:$0xf]
      %v834 = vld [vmem:[%s694 + $0x4] sm:$0xf]
      %v835 = vld [vmem:[%s694 + $0x8] sm:$0xf]
      %v836 = vld [vmem:[%s694 + $0xc] sm:$0xf]
      %v837 = vld [vmem:[%s694 + $0x10] sm:$0xf]
      %v838 = vld [vmem:[%s694 + $0x14] sm:$0xf]
      %v839 = vld [vmem:[%s694 + $0x18] sm:$0xf]
      %v840 = vld [vmem:[%s694 + $0x1c] sm:$0xf]
      %v841 = vld [vmem:[%s694 + $0x20] sm:$0xf]
      %v842 = vld [vmem:[%s694 + $0x24] sm:$0xf]
      %v843 = vld [vmem:[%s694 + $0x28] sm:$0xf]
      %v844 = vld [vmem:[%s694 + $0x2c] sm:$0xf]
      %v845 = vld [vmem:[%s694 + $0x30] sm:$0xf]
      %v846 = vld [vmem:[%s694 + $0x34] sm:$0xf]
      %v847 = vld [vmem:[%s694 + $0x38] sm:$0xf]
      %v848 = vld [vmem:[%s694 + $0x3c] sm:$0xf]
      %v849 = vld [vmem:[%s694 + $0x40] sm:$0xf]
      %v850 = vld [vmem:[%s694 + $0x44] sm:$0xf]
      %v851 = vld [vmem:[%s694 + $0x48] sm:$0xf]
      %v852 = vld [vmem:[%s694 + $0x4c] sm:$0xf]
      %v853 = vld [vmem:[%s694 + $0x50] sm:$0xf]
      %v854 = vld [vmem:[%s694 + $0x54] sm:$0xf]
      %v855 = vld [vmem:[%s694 + $0x58] sm:$0xf]
      %v856 = vld [vmem:[%s694 + $0x5c] sm:$0xf]
      %v857 = vld [vmem:[%s694 + $0x60] sm:$0xf]
      %v858 = vld [vmem:[%s694 + $0x64] sm:$0xf]
      %v859 = vld [vmem:[%s694 + $0x68] sm:$0xf]
      %v860 = vld [vmem:[%s694 + $0x6c] sm:$0xf]
      %v861 = vld [vmem:[%s694 + $0x70] sm:$0xf]
      %v862 = vld [vmem:[%s694 + $0x74] sm:$0xf]
      %v863 = vld [vmem:[%s694 + $0x78] sm:$0xf]
      %v864 = vld [vmem:[%s694 + $0x7c] sm:$0xf]
      %v865 = vld [vmem:[%s694 + $0x80] sm:$0xf]
      %v866 = vld [vmem:[%s694 + $0x84] sm:$0xf]
      %v867 = vld [vmem:[%s694 + $0x88] sm:$0xf]
      %v868 = vld [vmem:[%s694 + $0x8c] sm:$0xf]
      %v869 = vld [vmem:[%s694 + $0x90] sm:$0xf]
      %v870 = vld [vmem:[%s694 + $0x94] sm:$0xf]
      %v909 = vunpack.c.l.b16 %v833
      %v910 = vunpack.c.l.b16 %v834
      %v911 = vunpack.c.l.b16 %v835
      %v912 = vunpack.c.l.b16 %v836
      %v913 = vunpack.c.l.b16 %v837
      %v914 = vunpack.c.l.b16 %v838
      %v915 = vunpack.c.l.b16 %v839
      %v916 = vunpack.c.l.b16 %v840
      %v917 = vunpack.c.l.b16 %v841
      %v918 = vunpack.c.l.b16 %v842
      %v919 = vunpack.c.l.b16 %v843
      %v920 = vunpack.c.l.b16 %v844
      %v921 = vunpack.c.l.b16 %v845
      %v922 = vunpack.c.l.b16 %v846
      %v923 = vunpack.c.l.b16 %v847
      %v924 = vunpack.c.l.b16 %v848
      %v925 = vunpack.c.l.b16 %v849
      %v926 = vunpack.c.l.b16 %v850
      %v927 = vunpack.c.l.b16 %v851
      %v928 = vunpack.c.l.b16 %v852
      %v929 = vunpack.c.l.b16 %v853
      %v930 = vunpack.c.l.b16 %v854
      %v931 = vunpack.c.l.b16 %v855
      %v932 = vunpack.c.l.b16 %v856
      %v933 = vunpack.c.l.b16 %v857
      %v934 = vunpack.c.l.b16 %v858
      %v935 = vunpack.c.l.b16 %v859
      %v936 = vunpack.c.l.b16 %v860
      %v937 = vunpack.c.l.b16 %v861
      %v938 = vunpack.c.l.b16 %v862
      %v939 = vunpack.c.l.b16 %v863
      %v940 = vunpack.c.l.b16 %v864
      %v941 = vunpack.c.l.b16 %v865
      %v942 = vunpack.c.l.b16 %v866
      %v943 = vunpack.c.l.b16 %v867
      %v944 = vunpack.c.l.b16 %v868
      %v945 = vunpack.c.l.b16 %v869
      %v946 = vunpack.c.l.b16 %v870
      %v947 = vpack.c.b16 %v910, %v909
      %v948 = vpack.c.b16 %v912, %v911
      %v949 = vpack.c.b16 %v914, %v913
      %v950 = vpack.c.b16 %v916, %v915
      %v951 = vpack.c.b16 %v918, %v917
      %v952 = vpack.c.b16 %v920, %v919
      %v953 = vpack.c.b16 %v922, %v921
      %v954 = vpack.c.b16 %v924, %v923
      %v955 = vpack.c.b16 %v926, %v925
      %v956 = vpack.c.b16 %v928, %v927
      %v957 = vpack.c.b16 %v930, %v929
      %v958 = vpack.c.b16 %v932, %v931
      %v959 = vpack.c.b16 %v934, %v933
      %v960 = vpack.c.b16 %v936, %v935
      %v961 = vpack.c.b16 %v938, %v937
      %v962 = vpack.c.b16 %v940, %v939
      %v963 = vpack.c.b16 %v942, %v941
      %v964 = vpack.c.b16 %v944, %v943
      %v965 = vpack.c.b16 %v946, %v945
      %vm985 = vcmask 392192
      %v987 = vsel %vm985, %v829, 0
      %v990 = vsel %vm985, %v832, 0
      %992 = vmatprep.subr.bf16.mxu0 0
      %993 = vmatpush1.bf16.msra.mxu0 %v947
      %994 = vmatprep.subr.bf16.mxu0 0
      %995 = vmatpush1.bf16.msra.mxu0 %v948
      %996 = vmatprep.subr.bf16.mxu0 0
      %997 = vmatpush1.bf16.msra.mxu0 %v949
      %998 = vmatprep.subr.bf16.mxu0 0
      %999 = vmatpush1.bf16.msra.mxu0 %v950
      %1000 = vmatprep.subr.bf16.mxu0 0
      %1001 = vmatpush1.bf16.msra.mxu0 %v951
      %1002 = vmatprep.subr.bf16.mxu0 0
      %1003 = vmatpush1.bf16.msra.mxu0 %v952
      %1004 = vmatprep.subr.bf16.mxu0 0
      %1005 = vmatpush1.bf16.msra.mxu0 %v953
      %1006 = vmatprep.subr.bf16.mxu0 0
      %1007 = vmatpush1.bf16.msra.mxu0 %v954
      %1008 = vmatprep.subr.bf16.mxu0 0
      %1009 = vmatpush1.bf16.msra.mxu0 %v955
      %1010 = vmatprep.subr.bf16.mxu0 0
      %1011 = vmatpush1.bf16.msra.mxu0 %v956
      %1012 = vmatprep.subr.bf16.mxu0 0
      %1013 = vmatpush1.bf16.msra.mxu0 %v957
      %1014 = vmatprep.subr.bf16.mxu0 0
      %1015 = vmatpush1.bf16.msra.mxu0 %v958
      %1016 = vmatprep.subr.bf16.mxu0 0
      %1017 = vmatpush1.bf16.msra.mxu0 %v959
      %1018 = vmatprep.subr.bf16.mxu0 0
      %1019 = vmatpush1.bf16.msra.mxu0 %v960
      %1020 = vmatprep.subr.bf16.mxu0 0
      %1021 = vmatpush1.bf16.msra.mxu0 %v961
      %1022 = vmatprep.subr.bf16.mxu0 0
      %1023 = vmatpush1.bf16.msra.mxu0 %v962
      %1024 = vmatprep.mubr.bf16.mxu0 %v828
      %1025 = vmatmul.mubr.bf16.gmra.mrb[0].mxu0 %v827
      %v1026 = vpop.f32.mrb[0].mxu0
      %v1027 = vadd.f32 0.0, %v1026
      %v1028 = vpop.f32.mrb[0].mxu0
      %v1029 = vpop.f32.mrb[0].mxu0
      %v1030 = vadd.f32 0.0, %v1029
      %v1031 = vpop.f32.mrb[0].mxu0
      %1032 = vmatprep.mubr.bf16.mxu0 %v831
      %1033 = vmatmul.mubr.bf16.gmra.mrb[0].mxu0 %v830
      %v1034 = vpop.f32.mrb[0].mxu0
      %v1035 = vadd.f32 0.0, %v1034
      %v1036 = vpop.f32.mrb[0].mxu0
      %v1037 = vpop.f32.mrb[0].mxu0
      %v1038 = vadd.f32 0.0, %v1037
      %v1039 = vpop.f32.mrb[0].mxu0
      %1040 = vdwg.mxu0
      %1041 = vmatprep.subr.bf16.mxu0 0
      %1042 = vmatpush1.bf16.msra.mxu0 %v963
      %1043 = vmatprep.subr.bf16.mxu0 0
      %1044 = vmatpush1.bf16.msra.mxu0 %v964
      %1045 = vmatprep.subr.bf16.mxu0 0
      %1046 = vmatpush1.bf16.msra.mxu0 %v965
      %1047 = vmatprep.subr.bf16.mxu0 0
      %1048 = vmatpush1.bf16.msra.mxu0 0
      %1049 = vmatprep.subr.bf16.mxu0 0
      %1050 = vmatpush1.bf16.msra.mxu0 0
      %1051 = vmatprep.subr.bf16.mxu0 0
      %1052 = vmatpush1.bf16.msra.mxu0 0
      %1053 = vmatprep.subr.bf16.mxu0 0
      %1054 = vmatpush1.bf16.msra.mxu0 0
      %1055 = vmatprep.subr.bf16.mxu0 0
      %1056 = vmatpush1.bf16.msra.mxu0 0
      %1057 = vmatprep.subr.bf16.mxu0 0
      %1058 = vmatpush1.bf16.msra.mxu0 0
      %1059 = vmatprep.subr.bf16.mxu0 0
      %1060 = vmatpush1.bf16.msra.mxu0 0
      %1061 = vmatprep.subr.bf16.mxu0 0
      %1062 = vmatpush1.bf16.msra.mxu0 0
      %1063 = vmatprep.subr.bf16.mxu0 0
      %1064 = vmatpush1.bf16.msra.mxu0 0
      %1065 = vmatprep.subr.bf16.mxu0 0
      %1066 = vmatpush1.bf16.msra.mxu0 0
      %1067 = vmatprep.subr.bf16.mxu0 0
      %1068 = vmatpush1.bf16.msra.mxu0 0
      %1069 = vmatprep.subr.bf16.mxu0 0
      %1070 = vmatpush1.bf16.msra.mxu0 0
      %1071 = vmatprep.subr.bf16.mxu0 0
      %1072 = vmatpush1.bf16.msra.mxu0 0
      %1073 = vmatprep.mubr.bf16.mxu0 0
      %1074 = vmatmul.mubr.bf16.gmra.mrb[0].mxu0 %v987
      %v1075 = vpop.f32.mrb[0].mxu0
      %v1076 = vadd.f32 %v1027, %v1075
      %v1077 = vpop.f32.mrb[0].mxu0
      %v1078 = vpop.f32.mrb[0].mxu0
      %v1079 = vadd.f32 %v1030, %v1078
      %v1080 = vpop.f32.mrb[0].mxu0
      %1081 = vmatprep.mubr.bf16.mxu0 0
      %1082 = vmatmul.mubr.bf16.gmra.mrb[0].mxu0 %v990
      %v1083 = vpop.f32.mrb[0].mxu0
      %v1084 = vadd.f32 %v1035, %v1083
      %v1085 = vpop.f32.mrb[0].mxu0
      %v1086 = vpop.f32.mrb[0].mxu0
      %v1087 = vadd.f32 %v1038, %v1086
      %v1088 = vpop.f32.mrb[0].mxu0
      %1089 = vdwg.mxu0
      %v1090 = vpack.c.bf16 %v1079, %v1076
      %v1091 = vpack.c.bf16 %v1087, %v1084
      %v1092 = vld [vmem:[%s708] sm:$0xf]
      %v1093 = vld [vmem:[%s708 + $0x4] sm:$0xf]
      %v1094 = vld [vmem:[%s708 + $0x8] sm:$0xf]
      %v1095 = vld [vmem:[%s708 + $0xc] sm:$0xf]
      %v1096 = vld [vmem:[%s708 + $0x10] sm:$0xf]
      %v1097 = vld [vmem:[%s708 + $0x14] sm:$0xf]
      %v1098 = vld [vmem:[%s708 + $0x18] sm:$0xf]
      %v1099 = vld [vmem:[%s708 + $0x1c] sm:$0xf]
      %v1100 = vld [vmem:[%s708 + $0x20] sm:$0xf]
      %v1101 = vld [vmem:[%s708 + $0x24] sm:$0xf]
      %v1102 = vld [vmem:[%s708 + $0x28] sm:$0xf]
      %v1103 = vld [vmem:[%s708 + $0x2c] sm:$0xf]
      %v1104 = vld [vmem:[%s715] sm:$0xff]
      %v1105 = vld [vmem:[%s715 + $0x8] sm:$0xff]
      %v1106 = vld [vmem:[%s715 + $0x10] sm:$0xff]
      %v1107 = vld [vmem:[%s715 + $0x18] sm:$0xff]
      %v1108 = vld [vmem:[%s715 + $0x20] sm:$0xff]
      %v1109 = vld [vmem:[%s715 + $0x28] sm:$0xff]
      %v1110 = vld [vmem:[%s715 + $0x30] sm:$0xff]
      %v1111 = vld [vmem:[%s715 + $0x38] sm:$0xff]
      %v1112 = vld [vmem:[%s715 + $0x40] sm:$0xff]
      %v1113 = vld [vmem:[%s715 + $0x48] sm:$0xff]
      %v1114 = vld [vmem:[%s715 + $0x50] sm:$0xff]
      %v1115 = vld [vmem:[%s715 + $0x58] sm:$0xff]
      %v1116 = vld [vmem:[%s697] sm:$0x1]
      %1118 = vset.pattern.permute.xlu0 0
      %1119 = vperm.xlu0 %1118, %v1104
      %v1120 = vpop.permute.xlu0 %1119
      %1123 = vset.pattern.permute.xlu0 0
      %1124 = vperm.xlu0 %1123, %v1105
      %v1125 = vpop.permute.xlu0 %1124
      %1128 = vset.pattern.permute.xlu0 0
      %1129 = vperm.xlu0 %1128, %v1106
      %v1130 = vpop.permute.xlu0 %1129
      %1133 = vset.pattern.permute.xlu0 0
      %1134 = vperm.xlu0 %1133, %v1107
      %v1135 = vpop.permute.xlu0 %1134
      %v1138 = vlaneseq
      %v1139 = vshrl.u32 %v1138, 7
      %v1140 = vsub.s32 0, %v1139
      %v1141 = vrot.slane %v1116, %v1140
      %v1143 = vmul.f32 %v1120, %v1141
      %v1144 = vmul.f32 %v1125, %v1141
      %v1145 = vmul.f32 %v1130, %v1141
      %v1146 = vmul.f32 %v1135, %v1141
      %v1151 = vunpack.c.l.b16 %v1092
      %v1152 = vunpack.c.l.b16 %v1093
      %v1153 = vunpack.c.l.b16 %v1094
      %v1154 = vunpack.c.l.b16 %v1095
      %v1155 = vpack.c.b16 %v1152, %v1151
      %v1156 = vpack.c.b16 %v1154, %v1153
      %vm1157 = vcmask 261120
      %v1159 = vsel %vm1157, %v1155, 0
      %v1162 = vsel %vm1157, %v1156, 0
      %1164 = vmatprep.subr.bf16.mxu0 0
      %1165 = vmatpush1.bf16.msra.mxu0 %v1090
      %1166 = vmatprep.subr.bf16.mxu0 0
      %1167 = vmatpush1.bf16.msra.mxu0 %v1091
      %1168 = vmatprep.subr.bf16.mxu0 0
      %1169 = vmatpush1.bf16.msra.mxu0 0
      %1170 = vmatprep.subr.bf16.mxu0 0
      %1171 = vmatpush1.bf16.msra.mxu0 0
      %1172 = vmatprep.subr.bf16.mxu0 0
      %1173 = vmatpush1.bf16.msra.mxu0 0
      %1174 = vmatprep.subr.bf16.mxu0 0
      %1175 = vmatpush1.bf16.msra.mxu0 0
      %1176 = vmatprep.subr.bf16.mxu0 0
      %1177 = vmatpush1.bf16.msra.mxu0 0
      %1178 = vmatprep.subr.bf16.mxu0 0
      %1179 = vmatpush1.bf16.msra.mxu0 0
      %1180 = vmatprep.subr.bf16.mxu0 0
      %1181 = vmatpush1.bf16.msra.mxu0 0
      %1182 = vmatprep.subr.bf16.mxu0 0
      %1183 = vmatpush1.bf16.msra.mxu0 0
      %1184 = vmatprep.subr.bf16.mxu0 0
      %1185 = vmatpush1.bf16.msra.mxu0 0
      %1186 = vmatprep.subr.bf16.mxu0 0
      %1187 = vmatpush1.bf16.msra.mxu0 0
      %1188 = vmatprep.subr.bf16.mxu0 0
      %1189 = vmatpush1.bf16.msra.mxu0 0
      %1190 = vmatprep.subr.bf16.mxu0 0
      %1191 = vmatpush1.bf16.msra.mxu0 0
      %1192 = vmatprep.subr.bf16.mxu0 0
      %1193 = vmatpush1.bf16.msra.mxu0 0
      %1194 = vmatprep.subr.bf16.mxu0 0
      %1195 = vmatpush1.bf16.msra.mxu0 0
      %1196 = vmatprep.mubr.bf16.mxu0 0
      %1197 = vmatmul.mubr.bf16.gmra.mrb[0].mxu0 %v1159
      %v1198 = vpop.f32.mrb[0].mxu0
      %v1199 = vadd.f32 %v1143, %v1198
      %v1200 = vpop.f32.mrb[0].mxu0
      %v1201 = vpop.f32.mrb[0].mxu0
      %v1202 = vadd.f32 %v1144, %v1201
      %v1203 = vpop.f32.mrb[0].mxu0
      %1204 = vmatprep.mubr.bf16.mxu0 0
      %1205 = vmatmul.mubr.bf16.gmra.mrb[0].mxu0 %v1162
      %v1206 = vpop.f32.mrb[0].mxu0
      %v1207 = vadd.f32 %v1145, %v1206
      %v1208 = vpop.f32.mrb[0].mxu0
      %v1209 = vpop.f32.mrb[0].mxu0
      %v1210 = vadd.f32 %v1146, %v1209
      %v1211 = vpop.f32.mrb[0].mxu0
      %1212 = vdwg.mxu0
      %v1213 = vpack.c.bf16 %v1202, %v1199
      %v1214 = vpack.c.bf16 %v1210, %v1207
      %1215 = vst [vmem:[#allocation2] sm:$0xff] %v1213
      %1216 = vst [vmem:[#allocation2 + $0x18] sm:$0xff] %v1214
      %1218 = vset.pattern.permute.xlu0 0
      %1219 = vperm.xlu0 %1218, %v1108
      %v1220 = vpop.permute.xlu0 %1219
      %1223 = vset.pattern.permute.xlu0 0
      %1224 = vperm.xlu0 %1223, %v1109
      %v1225 = vpop.permute.xlu0 %1224
      %1228 = vset.pattern.permute.xlu0 0
      %1229 = vperm.xlu0 %1228, %v1110
      %v1230 = vpop.permute.xlu0 %1229
      %1233 = vset.pattern.permute.xlu0 0
      %1234 = vperm.xlu0 %1233, %v1111
      %v1235 = vpop.permute.xlu0 %1234
      %v1237 = vmul.f32 %v1220, %v1141
      %v1238 = vmul.f32 %v1225, %v1141
      %v1239 = vmul.f32 %v1230, %v1141
      %v1240 = vmul.f32 %v1235, %v1141
      %v1245 = vunpack.c.l.b16 %v1096
      %v1246 = vunpack.c.l.b16 %v1097
      %v1247 = vunpack.c.l.b16 %v1098
      %v1248 = vunpack.c.l.b16 %v1099
      %v1249 = vpack.c.b16 %v1246, %v1245
      %v1250 = vpack.c.b16 %v1248, %v1247
      %v1252 = vsel %vm1157, %v1249, 0
      %v1255 = vsel %vm1157, %v1250, 0
      %1257 = vmatprep.subr.bf16.mxu0 0
      %1258 = vmatpush1.bf16.msra.mxu0 %v1090
      %1259 = vmatprep.subr.bf16.mxu0 0
      %1260 = vmatpush1.bf16.msra.mxu0 %v1091
      %1261 = vmatprep.subr.bf16.mxu0 0
      %1262 = vmatpush1.bf16.msra.mxu0 0
      %1263 = vmatprep.subr.bf16.mxu0 0
      %1264 = vmatpush1.bf16.msra.mxu0 0
      %1265 = vmatprep.subr.bf16.mxu0 0
      %1266 = vmatpush1.bf16.msra.mxu0 0
      %1267 = vmatprep.subr.bf16.mxu0 0
      %1268 = vmatpush1.bf16.msra.mxu0 0
      %1269 = vmatprep.subr.bf16.mxu0 0
      %1270 = vmatpush1.bf16.msra.mxu0 0
      %1271 = vmatprep.subr.bf16.mxu0 0
      %1272 = vmatpush1.bf16.msra.mxu0 0
      %1273 = vmatprep.subr.bf16.mxu0 0
      %1274 = vmatpush1.bf16.msra.mxu0 0
      %1275 = vmatprep.subr.bf16.mxu0 0
      %1276 = vmatpush1.bf16.msra.mxu0 0
      %1277 = vmatprep.subr.bf16.mxu0 0
      %1278 = vmatpush1.bf16.msra.mxu0 0
      %1279 = vmatprep.subr.bf16.mxu0 0
      %1280 = vmatpush1.bf16.msra.mxu0 0
      %1281 = vmatprep.subr.bf16.mxu0 0
      %1282 = vmatpush1.bf16.msra.mxu0 0
      %1283 = vmatprep.subr.bf16.mxu0 0
      %1284 = vmatpush1.bf16.msra.mxu0 0
      %1285 = vmatprep.subr.bf16.mxu0 0
      %1286 = vmatpush1.bf16.msra.mxu0 0
      %1287 = vmatprep.subr.bf16.mxu0 0
      %1288 = vmatpush1.bf16.msra.mxu0 0
      %1289 = vmatprep.mubr.bf16.mxu0 0
      %1290 = vmatmul.mubr.bf16.gmra.mrb[0].mxu0 %v1252
      %v1291 = vpop.f32.mrb[0].mxu0
      %v1292 = vadd.f32 %v1237, %v1291
      %v1293 = vpop.f32.mrb[0].mxu0
      %v1294 = vpop.f32.mrb[0].mxu0
      %v1295 = vadd.f32 %v1238, %v1294
      %v1296 = vpop.f32.mrb[0].mxu0
      %1297 = vmatprep.mubr.bf16.mxu0 0
      %1298 = vmatmul.mubr.bf16.gmra.mrb[0].mxu0 %v1255
      %v1299 = vpop.f32.mrb[0].mxu0
      %v1300 = vadd.f32 %v1239, %v1299
      %v1301 = vpop.f32.mrb[0].mxu0
      %v1302 = vpop.f32.mrb[0].mxu0
      %v1303 = vadd.f32 %v1240, %v1302
      %v1304 = vpop.f32.mrb[0].mxu0
      %1305 = vdwg.mxu0
      %v1306 = vpack.c.bf16 %v1295, %v1292
      %v1307 = vpack.c.bf16 %v1303, %v1300
      %1308 = vst [vmem:[#allocation2 + $0x8] sm:$0xff] %v1306
      %1309 = vst [vmem:[#allocation2 + $0x20] sm:$0xff] %v1307
      %1311 = vset.pattern.permute.xlu0 0
      %1312 = vperm.xlu0 %1311, %v1112
      %v1313 = vpop.permute.xlu0 %1312
      %1316 = vset.pattern.permute.xlu0 0
      %1317 = vperm.xlu0 %1316, %v1113
      %v1318 = vpop.permute.xlu0 %1317
      %1321 = vset.pattern.permute.xlu0 0
      %1322 = vperm.xlu0 %1321, %v1114
      %v1323 = vpop.permute.xlu0 %1322
      %1326 = vset.pattern.permute.xlu0 0
      %1327 = vperm.xlu0 %1326, %v1115
      %v1328 = vpop.permute.xlu0 %1327
      %v1330 = vmul.f32 %v1313, %v1141
      %v1331 = vmul.f32 %v1318, %v1141
      %v1332 = vmul.f32 %v1323, %v1141
      %v1333 = vmul.f32 %v1328, %v1141
      %v1338 = vunpack.c.l.b16 %v1100
      %v1339 = vunpack.c.l.b16 %v1101
      %v1340 = vunpack.c.l.b16 %v1102
      %v1341 = vunpack.c.l.b16 %v1103
      %v1342 = vpack.c.b16 %v1339, %v1338
      %v1343 = vpack.c.b16 %v1341, %v1340
      %v1345 = vsel %vm1157, %v1342, 0
      %v1348 = vsel %vm1157, %v1343, 0
      %1350 = vmatprep.subr.bf16.mxu0 0
      %1351 = vmatpush1.bf16.msra.mxu0 %v1090
      %1352 = vmatprep.subr.bf16.mxu0 0
      %1353 = vmatpush1.bf16.msra.mxu0 %v1091
      %1354 = vmatprep.subr.bf16.mxu0 0
      %1355 = vmatpush1.bf16.msra.mxu0 0
      %1356 = vmatprep.subr.bf16.mxu0 0
      %1357 = vmatpush1.bf16.msra.mxu0 0
      %1358 = vmatprep.subr.bf16.mxu0 0
      %1359 = vmatpush1.bf16.msra.mxu0 0
      %1360 = vmatprep.subr.bf16.mxu0 0
      %1361 = vmatpush1.bf16.msra.mxu0 0
      %1362 = vmatprep.subr.bf16.mxu0 0
      %1363 = vmatpush1.bf16.msra.mxu0 0
      %1364 = vmatprep.subr.bf16.mxu0 0
      %1365 = vmatpush1.bf16.msra.mxu0 0
      %1366 = vmatprep.subr.bf16.mxu0 0
      %1367 = vmatpush1.bf16.msra.mxu0 0
      %1368 = vmatprep.subr.bf16.mxu0 0
      %1369 = vmatpush1.bf16.msra.mxu0 0
      %1370 = vmatprep.subr.bf16.mxu0 0
      %1371 = vmatpush1.bf16.msra.mxu0 0
      %1372 = vmatprep.subr.bf16.mxu0 0
      %1373 = vmatpush1.bf16.msra.mxu0 0
      %1374 = vmatprep.subr.bf16.mxu0 0
      %1375 = vmatpush1.bf16.msra.mxu0 0
      %1376 = vmatprep.subr.bf16.mxu0 0
      %1377 = vmatpush1.bf16.msra.mxu0 0
      %1378 = vmatprep.subr.bf16.mxu0 0
      %1379 = vmatpush1.bf16.msra.mxu0 0
      %1380 = vmatprep.subr.bf16.mxu0 0
      %1381 = vmatpush1.bf16.msra.mxu0 0
      %1382 = vmatprep.mubr.bf16.mxu0 0
      %1383 = vmatmul.mubr.bf16.gmra.mrb[0].mxu0 %v1345
      %v1384 = vpop.f32.mrb[0].mxu0
      %v1385 = vadd.f32 %v1330, %v1384
      %v1386 = vpop.f32.mrb[0].mxu0
      %v1387 = vpop.f32.mrb[0].mxu0
      %v1388 = vadd.f32 %v1331, %v1387
      %v1389 = vpop.f32.mrb[0].mxu0
      %1390 = vmatprep.mubr.bf16.mxu0 0
      %1391 = vmatmul.mubr.bf16.gmra.mrb[0].mxu0 %v1348
      %v1392 = vpop.f32.mrb[0].mxu0
      %v1393 = vadd.f32 %v1332, %v1392
      %v1394 = vpop.f32.mrb[0].mxu0
      %v1395 = vpop.f32.mrb[0].mxu0
      %v1396 = vadd.f32 %v1333, %v1395
      %v1397 = vpop.f32.mrb[0].mxu0
      %1398 = vdwg.mxu0
      %v1399 = vpack.c.bf16 %v1388, %v1385
      %v1400 = vpack.c.bf16 %v1396, %v1393
      %1401 = vst [vmem:[#allocation2 + $0x10] sm:$0xff] %v1399
      %1402 = vst [vmem:[#allocation2 + $0x28] sm:$0xff] %v1400
      %v1403 = vld [vmem:[#allocation2] sm:$0xff]
      %v1404 = vld [vmem:[#allocation2 + $0x8] sm:$0xff]
      %v1405 = vld [vmem:[#allocation2 + $0x10] sm:$0xff]
      %v1406 = vld [vmem:[#allocation2 + $0x18] sm:$0xff]
      %v1407 = vld [vmem:[#allocation2 + $0x20] sm:$0xff]
      %v1408 = vld [vmem:[#allocation2 + $0x28] sm:$0xff]
      %v1409 = vld [vmem:[%s722] sm:$0xf]
      %v1410 = vld [vmem:[%s722 + $0x4] sm:$0xf]
      %v1411 = vld [vmem:[%s722 + $0x8] sm:$0xf]
      %v1412 = vld [vmem:[%s722 + $0xc] sm:$0xf]
      %v1413 = vld [vmem:[%s729] sm:$0xff]
      %v1414 = vld [vmem:[%s729 + $0x8] sm:$0xff]
      %v1415 = vld [vmem:[%s729 + $0x10] sm:$0xff]
      %v1416 = vld [vmem:[%s729 + $0x18] sm:$0xff]
      %1418 = vset.pattern.permute.xlu0 0
      %1419 = vperm.xlu0 %1418, %v1413
      %v1420 = vpop.permute.xlu0 %1419
      %1423 = vset.pattern.permute.xlu0 0
      %1424 = vperm.xlu0 %1423, %v1414
      %v1425 = vpop.permute.xlu0 %1424
      %1428 = vset.pattern.permute.xlu0 0
      %1429 = vperm.xlu0 %1428, %v1415
      %v1430 = vpop.permute.xlu0 %1429
      %1433 = vset.pattern.permute.xlu0 0
      %1434 = vperm.xlu0 %1433, %v1416
      %v1435 = vpop.permute.xlu0 %1434
      %v1441 = vunpack.c.l.b16 %v1409
      %v1442 = vunpack.c.l.b16 %v1410
      %v1443 = vunpack.c.l.b16 %v1411
      %v1444 = vunpack.c.l.b16 %v1412
      %v1445 = vpack.c.b16 %v1442, %v1441
      %v1446 = vpack.c.b16 %v1444, %v1443
      %v1448 = vsel %vm1157, %v1445, 0
      %v1451 = vsel %vm1157, %v1446, 0
      %1453 = vmatprep.subr.bf16.mxu0 %v1404
      %1454 = vmatpush1.bf16.msra.mxu0 %v1403
      %1455 = vmatprep.subr.bf16.mxu0 %v1407
      %1456 = vmatpush1.bf16.msra.mxu0 %v1406
      %1457 = vmatprep.subr.bf16.mxu0 0
      %1458 = vmatpush1.bf16.msra.mxu0 0
      %1459 = vmatprep.subr.bf16.mxu0 0
      %1460 = vmatpush1.bf16.msra.mxu0 0
      %1461 = vmatprep.subr.bf16.mxu0 0
      %1462 = vmatpush1.bf16.msra.mxu0 0
      %1463 = vmatprep.subr.bf16.mxu0 0
      %1464 = vmatpush1.bf16.msra.mxu0 0
      %1465 = vmatprep.subr.bf16.mxu0 0
      %1466 = vmatpush1.bf16.msra.mxu0 0
      %1467 = vmatprep.subr.bf16.mxu0 0
      %1468 = vmatpush1.bf16.msra.mxu0 0
      %1469 = vmatprep.subr.bf16.mxu0 0
      %1470 = vmatpush1.bf16.msra.mxu0 0
      %1471 = vmatprep.subr.bf16.mxu0 0
      %1472 = vmatpush1.bf16.msra.mxu0 0
      %1473 = vmatprep.subr.bf16.mxu0 0
      %1474 = vmatpush1.bf16.msra.mxu0 0
      %1475 = vmatprep.subr.bf16.mxu0 0
      %1476 = vmatpush1.bf16.msra.mxu0 0
      %1477 = vmatprep.subr.bf16.mxu0 0
      %1478 = vmatpush1.bf16.msra.mxu0 0
      %1479 = vmatprep.subr.bf16.mxu0 0
      %1480 = vmatpush1.bf16.msra.mxu0 0
      %1481 = vmatprep.subr.bf16.mxu0 0
      %1482 = vmatpush1.bf16.msra.mxu0 0
      %1483 = vmatprep.subr.bf16.mxu0 0
      %1484 = vmatpush1.bf16.msra.mxu0 0
      %1485 = vmatprep.mubr.bf16.mxu0 0
      %1486 = vmatmul.mubr.bf16.gmra.mrb[0].mxu0 %v1448
      %v1487 = vpop.f32.mrb[0].mxu0
      %v1488 = vadd.f32 %v1420, %v1487
      %v1489 = vpop.f32.mrb[0].mxu0
      %v1490 = vadd.f32 %v1420, %v1489
      %v1491 = vpop.f32.mrb[0].mxu0
      %v1492 = vadd.f32 %v1425, %v1491
      %v1493 = vpop.f32.mrb[0].mxu0
      %v1494 = vadd.f32 %v1425, %v1493
      %1495 = vmatprep.mubr.bf16.mxu0 0
      %1496 = vmatmul.mubr.bf16.gmra.mrb[0].mxu0 %v1451
      %v1497 = vpop.f32.mrb[0].mxu0
      %v1498 = vadd.f32 %v1430, %v1497
      %v1499 = vpop.f32.mrb[0].mxu0
      %v1500 = vadd.f32 %v1430, %v1499
      %v1501 = vpop.f32.mrb[0].mxu0
      %v1502 = vadd.f32 %v1435, %v1501
      %v1503 = vpop.f32.mrb[0].mxu0
      %v1504 = vadd.f32 %v1435, %v1503
      %1505 = vdwg.mxu0
      %1506 = vmatprep.subr.bf16.mxu0 0
      %1507 = vmatpush1.bf16.msra.mxu0 %v1405
      %1508 = vmatprep.subr.bf16.mxu0 0
      %1509 = vmatpush1.bf16.msra.mxu0 %v1408
      %1510 = vmatprep.subr.bf16.mxu0 0
      %1511 = vmatpush1.bf16.msra.mxu0 0
      %1512 = vmatprep.subr.bf16.mxu0 0
      %1513 = vmatpush1.bf16.msra.mxu0 0
      %1514 = vmatprep.subr.bf16.mxu0 0
      %1515 = vmatpush1.bf16.msra.mxu0 0
      %1516 = vmatprep.subr.bf16.mxu0 0
      %1517 = vmatpush1.bf16.msra.mxu0 0
      %1518 = vmatprep.subr.bf16.mxu0 0
      %1519 = vmatpush1.bf16.msra.mxu0 0
      %1520 = vmatprep.subr.bf16.mxu0 0
      %1521 = vmatpush1.bf16.msra.mxu0 0
      %1522 = vmatprep.subr.bf16.mxu0 0
      %1523 = vmatpush1.bf16.msra.mxu0 0
      %1524 = vmatprep.subr.bf16.mxu0 0
      %1525 = vmatpush1.bf16.msra.mxu0 0
      %1526 = vmatprep.subr.bf16.mxu0 0
      %1527 = vmatpush1.bf16.msra.mxu0 0
      %1528 = vmatprep.subr.bf16.mxu0 0
      %1529 = vmatpush1.bf16.msra.mxu0 0
      %1530 = vmatprep.subr.bf16.mxu0 0
      %1531 = vmatpush1.bf16.msra.mxu0 0
      %1532 = vmatprep.subr.bf16.mxu0 0
      %1533 = vmatpush1.bf16.msra.mxu0 0
      %1534 = vmatprep.subr.bf16.mxu0 0
      %1535 = vmatpush1.bf16.msra.mxu0 0
      %1536 = vmatprep.subr.bf16.mxu0 0
      %1537 = vmatpush1.bf16.msra.mxu0 0
      %1538 = vmatprep.mubr.bf16.mxu0 0
      %1539 = vmatmul.mubr.bf16.gmra.mrb[0].mxu0 %v1448
      %v1540 = vpop.f32.mrb[0].mxu0
      %v1541 = vadd.f32 %v1420, %v1540
      %v1542 = vpop.f32.mrb[0].mxu0
      %v1543 = vpop.f32.mrb[0].mxu0
      %v1544 = vadd.f32 %v1425, %v1543
      %v1545 = vpop.f32.mrb[0].mxu0
      %1546 = vmatprep.mubr.bf16.mxu0 0
      %1547 = vmatmul.mubr.bf16.gmra.mrb[0].mxu0 %v1451
      %v1548 = vpop.f32.mrb[0].mxu0
      %v1549 = vadd.f32 %v1430, %v1548
      %v1550 = vpop.f32.mrb[0].mxu0
      %v1551 = vpop.f32.mrb[0].mxu0
      %v1552 = vadd.f32 %v1435, %v1551
      %v1553 = vpop.f32.mrb[0].mxu0
      %1554 = vdwg.mxu0
      %v1555 = vld [vmem:[%s736] sm:$0xf]
      %v1556 = vld [vmem:[%s736 + $0x4] sm:$0xf]
      %v1557 = vld [vmem:[%s736 + $0x8] sm:$0xf]
      %v1558 = vld [vmem:[%s736 + $0xc] sm:$0xf]
      %v1559 = vld [vmem:[%s743] sm:$0xff]
      %v1560 = vld [vmem:[%s743 + $0x8] sm:$0xff]
      %v1561 = vld [vmem:[%s743 + $0x10] sm:$0xff]
      %v1562 = vld [vmem:[%s743 + $0x18] sm:$0xff]
      %1564 = vset.pattern.permute.xlu0 0
      %1565 = vperm.xlu0 %1564, %v1559
      %v1566 = vpop.permute.xlu0 %1565
      %1569 = vset.pattern.permute.xlu0 0
      %1570 = vperm.xlu0 %1569, %v1560
      %v1571 = vpop.permute.xlu0 %1570
      %1574 = vset.pattern.permute.xlu0 0
      %1575 = vperm.xlu0 %1574, %v1561
      %v1576 = vpop.permute.xlu0 %1575
      %1579 = vset.pattern.permute.xlu0 0
      %1580 = vperm.xlu0 %1579, %v1562
      %v1581 = vpop.permute.xlu0 %1580
      %v1587 = vunpack.c.l.b16 %v1555
      %v1588 = vunpack.c.l.b16 %v1556
      %v1589 = vunpack.c.l.b16 %v1557
      %v1590 = vunpack.c.l.b16 %v1558
      %v1591 = vpack.c.b16 %v1588, %v1587
      %v1592 = vpack.c.b16 %v1590, %v1589
      %v1594 = vsel %vm1157, %v1591, 0
      %v1597 = vsel %vm1157, %v1592, 0
      %1599 = vmatprep.subr.bf16.mxu0 %v1404
      %1600 = vmatpush1.bf16.msra.mxu0 %v1403
      %1601 = vmatprep.subr.bf16.mxu0 %v1407
      %1602 = vmatpush1.bf16.msra.mxu0 %v1406
      %1603 = vmatprep.subr.bf16.mxu0 0
      %1604 = vmatpush1.bf16.msra.mxu0 0
      %1605 = vmatprep.subr.bf16.mxu0 0
      %1606 = vmatpush1.bf16.msra.mxu0 0
      %1607 = vmatprep.subr.bf16.mxu0 0
      %1608 = vmatpush1.bf16.msra.mxu0 0
      %1609 = vmatprep.subr.bf16.mxu0 0
      %1610 = vmatpush1.bf16.msra.mxu0 0
      %1611 = vmatprep.subr.bf16.mxu0 0
      %1612 = vmatpush1.bf16.msra.mxu0 0
      %1613 = vmatprep.subr.bf16.mxu0 0
      %1614 = vmatpush1.bf16.msra.mxu0 0
      %1615 = vmatprep.subr.bf16.mxu0 0
      %1616 = vmatpush1.bf16.msra.mxu0 0
      %1617 = vmatprep.subr.bf16.mxu0 0
      %1618 = vmatpush1.bf16.msra.mxu0 0
      %1619 = vmatprep.subr.bf16.mxu0 0
      %1620 = vmatpush1.bf16.msra.mxu0 0
      %1621 = vmatprep.subr.bf16.mxu0 0
      %1622 = vmatpush1.bf16.msra.mxu0 0
      %1623 = vmatprep.subr.bf16.mxu0 0
      %1624 = vmatpush1.bf16.msra.mxu0 0
      %1625 = vmatprep.subr.bf16.mxu0 0
      %1626 = vmatpush1.bf16.msra.mxu0 0
      %1627 = vmatprep.subr.bf16.mxu0 0
      %1628 = vmatpush1.bf16.msra.mxu0 0
      %1629 = vmatprep.subr.bf16.mxu0 0
      %1630 = vmatpush1.bf16.msra.mxu0 0
      %1631 = vmatprep.mubr.bf16.mxu0 0
      %1632 = vmatmul.mubr.bf16.gmra.mrb[0].mxu0 %v1594
      %v1633 = vpop.f32.mrb[0].mxu0
      %v1634 = vadd.f32 %v1566, %v1633
      %v1635 = vpop.f32.mrb[0].mxu0
      %v1636 = vadd.f32 %v1566, %v1635
      %v1637 = vpop.f32.mrb[0].mxu0
      %v1638 = vadd.f32 %v1571, %v1637
      %v1639 = vpop.f32.mrb[0].mxu0
      %v1640 = vadd.f32 %v1571, %v1639
      %1641 = vmatprep.mubr.bf16.mxu0 0
      %1642 = vmatmul.mubr.bf16.gmra.mrb[0].mxu0 %v1597
      %v1643 = vpop.f32.mrb[0].mxu0
      %v1644 = vadd.f32 %v1576, %v1643
      %v1645 = vpop.f32.mrb[0].mxu0
      %v1646 = vadd.f32 %v1576, %v1645
      %v1647 = vpop.f32.mrb[0].mxu0
      %v1648 = vadd.f32 %v1581, %v1647
      %v1649 = vpop.f32.mrb[0].mxu0
      %v1650 = vadd.f32 %v1581, %v1649
      %1651 = vdwg.mxu0
      %1652 = vmatprep.subr.bf16.mxu0 0
      %1653 = vmatpush1.bf16.msra.mxu0 %v1405
      %1654 = vmatprep.subr.bf16.mxu0 0
      %1655 = vmatpush1.bf16.msra.mxu0 %v1408
      %1656 = vmatprep.subr.bf16.mxu0 0
      %1657 = vmatpush1.bf16.msra.mxu0 0
      %1658 = vmatprep.subr.bf16.mxu0 0
      %1659 = vmatpush1.bf16.msra.mxu0 0
      %1660 = vmatprep.subr.bf16.mxu0 0
      %1661 = vmatpush1.bf16.msra.mxu0 0
      %1662 = vmatprep.subr.bf16.mxu0 0
      %1663 = vmatpush1.bf16.msra.mxu0 0
      %1664 = vmatprep.subr.bf16.mxu0 0
      %1665 = vmatpush1.bf16.msra.mxu0 0
      %1666 = vmatprep.subr.bf16.mxu0 0
      %1667 = vmatpush1.bf16.msra.mxu0 0
      %1668 = vmatprep.subr.bf16.mxu0 0
      %1669 = vmatpush1.bf16.msra.mxu0 0
      %1670 = vmatprep.subr.bf16.mxu0 0
      %1671 = vmatpush1.bf16.msra.mxu0 0
      %1672 = vmatprep.subr.bf16.mxu0 0
      %1673 = vmatpush1.bf16.msra.mxu0 0
      %1674 = vmatprep.subr.bf16.mxu0 0
      %1675 = vmatpush1.bf16.msra.mxu0 0
      %1676 = vmatprep.subr.bf16.mxu0 0
      %1677 = vmatpush1.bf16.msra.mxu0 0
      %1678 = vmatprep.subr.bf16.mxu0 0
      %1679 = vmatpush1.bf16.msra.mxu0 0
      %1680 = vmatprep.subr.bf16.mxu0 0
      %1681 = vmatpush1.bf16.msra.mxu0 0
      %1682 = vmatprep.subr.bf16.mxu0 0
      %1683 = vmatpush1.bf16.msra.mxu0 0
      %1684 = vmatprep.mubr.bf16.mxu0 0
      %1685 = vmatmul.mubr.bf16.gmra.mrb[0].mxu0 %v1594
      %v1686 = vpop.f32.mrb[0].mxu0
      %v1687 = vadd.f32 %v1566, %v1686
      %v1688 = vpop.f32.mrb[0].mxu0
      %v1689 = vpop.f32.mrb[0].mxu0
      %v1690 = vadd.f32 %v1571, %v1689
      %v1691 = vpop.f32.mrb[0].mxu0
      %1692 = vmatprep.mubr.bf16.mxu0 0
      %1693 = vmatmul.mubr.bf16.gmra.mrb[0].mxu0 %v1597
      %v1694 = vpop.f32.mrb[0].mxu0
      %v1695 = vadd.f32 %v1576, %v1694
      %v1696 = vpop.f32.mrb[0].mxu0
      %v1697 = vpop.f32.mrb[0].mxu0
      %v1698 = vadd.f32 %v1581, %v1697
      %v1699 = vpop.f32.mrb[0].mxu0
      %1700 = vdwg.mxu0
      %v1701 = vtanh.pop %v1488
      %v1702 = vtanh.pop %v1490
      %v1703 = vtanh.pop %v1541
      %v1704 = vtanh.pop %v1492
      %v1705 = vtanh.pop %v1494
      %v1706 = vtanh.pop %v1544
      %v1707 = vtanh.pop %v1498
      %v1708 = vtanh.pop %v1500
      %v1709 = vtanh.pop %v1549
      %v1710 = vtanh.pop %v1502
      %v1711 = vtanh.pop %v1504
      %v1712 = vtanh.pop %v1552
      %v1713 = vmul.f32 %v1634, 0.5
      %v1714 = vmul.f32 %v1636, 0.5
      %v1715 = vmul.f32 %v1687, 0.5
      %v1716 = vmul.f32 %v1638, 0.5
      %v1717 = vmul.f32 %v1640, 0.5
      %v1718 = vmul.f32 %v1690, 0.5
      %v1719 = vmul.f32 %v1644, 0.5
      %v1720 = vmul.f32 %v1646, 0.5
      %v1721 = vmul.f32 %v1695, 0.5
      %v1722 = vmul.f32 %v1648, 0.5
      %v1723 = vmul.f32 %v1650, 0.5
      %v1724 = vmul.f32 %v1698, 0.5
      %v1725 = vtanh.pop %v1713
      %v1726 = vtanh.pop %v1714
      %v1727 = vtanh.pop %v1715
      %v1728 = vtanh.pop %v1716
      %v1729 = vtanh.pop %v1717
      %v1730 = vtanh.pop %v1718
      %v1731 = vtanh.pop %v1719
      %v1732 = vtanh.pop %v1720
      %v1733 = vtanh.pop %v1721
      %v1734 = vtanh.pop %v1722
      %v1735 = vtanh.pop %v1723
      %v1736 = vtanh.pop %v1724
      %v1737 = vadd.f32 %v1725, 1.0
      %v1738 = vadd.f32 %v1726, 1.0
      %v1739 = vadd.f32 %v1727, 1.0
      %v1740 = vadd.f32 %v1728, 1.0
      %v1741 = vadd.f32 %v1729, 1.0
      %v1742 = vadd.f32 %v1730, 1.0
      %v1743 = vadd.f32 %v1731, 1.0
      %v1744 = vadd.f32 %v1732, 1.0
      %v1745 = vadd.f32 %v1733, 1.0
      %v1746 = vadd.f32 %v1734, 1.0
      %v1747 = vadd.f32 %v1735, 1.0
      %v1748 = vadd.f32 %v1736, 1.0
      %v1749 = vmul.f32 %v1737, 0.5
      %v1750 = vmul.f32 %v1738, 0.5
      %v1751 = vmul.f32 %v1739, 0.5
      %v1752 = vmul.f32 %v1740, 0.5
      %v1753 = vmul.f32 %v1741, 0.5
      %v1754 = vmul.f32 %v1742, 0.5
      %v1755 = vmul.f32 %v1743, 0.5
      %v1756 = vmul.f32 %v1744, 0.5
      %v1757 = vmul.f32 %v1745, 0.5
      %v1758 = vmul.f32 %v1746, 0.5
      %v1759 = vmul.f32 %v1747, 0.5
      %v1760 = vmul.f32 %v1748, 0.5
      %v1761 = vmul.f32 %v1701, %v1749
      %v1762 = vmul.f32 %v1702, %v1750
      %v1763 = vmul.f32 %v1703, %v1751
      %v1764 = vmul.f32 %v1704, %v1752
      %v1765 = vmul.f32 %v1705, %v1753
      %v1766 = vmul.f32 %v1706, %v1754
      %v1767 = vmul.f32 %v1707, %v1755
      %v1768 = vmul.f32 %v1708, %v1756
      %v1769 = vmul.f32 %v1709, %v1757
      %v1770 = vmul.f32 %v1710, %v1758
      %v1771 = vmul.f32 %v1711, %v1759
      %v1772 = vmul.f32 %v1712, %v1760
      %v1773 = vld [vmem:[%s750] sm:$0xf]
      %v1774 = vld [vmem:[%s750 + $0x4] sm:$0xf]
      %v1775 = vld [vmem:[%s750 + $0x8] sm:$0xf]
      %v1776 = vld [vmem:[%s750 + $0xc] sm:$0xf]
      %v1777 = vld [vmem:[%s750 + $0x10] sm:$0xf]
      %v1778 = vld [vmem:[%s750 + $0x14] sm:$0xf]
      %v1779 = vld [vmem:[%s750 + $0x18] sm:$0xf]
      %v1780 = vld [vmem:[%s750 + $0x1c] sm:$0xf]
      %v1781 = vpack.c.bf16 %v1764, %v1761
      %v1782 = vpack.c.bf16 %v1765, %v1762
      %v1783 = vpack.c.bf16 %v1766, %v1763
      %v1784 = vpack.c.bf16 %v1770, %v1767
      %v1785 = vpack.c.bf16 %v1771, %v1768
      %v1786 = vpack.c.bf16 %v1772, %v1769
      %v1795 = vunpack.c.l.b16 %v1773
      %v1796 = vunpack.c.l.b16 %v1774
      %v1797 = vunpack.c.l.b16 %v1775
      %v1798 = vunpack.c.l.b16 %v1776
      %v1799 = vunpack.c.l.b16 %v1777
      %v1800 = vunpack.c.l.b16 %v1778
      %v1801 = vunpack.c.l.b16 %v1779
      %v1802 = vunpack.c.l.b16 %v1780
      %v1803 = vpack.c.b16 %v1796, %v1795
      %v1804 = vpack.c.b16 %v1798, %v1797
      %v1805 = vpack.c.b16 %v1800, %v1799
      %v1806 = vpack.c.b16 %v1802, %v1801
      %v1808 = vsel %vm1157, %v1803, 0
      %v1811 = vsel %vm1157, %v1804, 0
      %v1814 = vsel %vm1157, %v1805, 0
      %v1817 = vsel %vm1157, %v1806, 0
      %1819 = vmatprep.subr.bf16.mxu0 %v1782
      %1820 = vmatpush1.bf16.msra.mxu0 %v1781
      %1821 = vmatprep.subr.bf16.mxu0 %v1785
      %1822 = vmatpush1.bf16.msra.mxu0 %v1784
      %1823 = vmatprep.subr.bf16.mxu0 0
      %1824 = vmatpush1.bf16.msra.mxu0 0
      %1825 = vmatprep.subr.bf16.mxu0 0
      %1826 = vmatpush1.bf16.msra.mxu0 0
      %1827 = vmatprep.subr.bf16.mxu0 0
      %1828 = vmatpush1.bf16.msra.mxu0 0
      %1829 = vmatprep.subr.bf16.mxu0 0
      %1830 = vmatpush1.bf16.msra.mxu0 0
      %1831 = vmatprep.subr.bf16.mxu0 0
      %1832 = vmatpush1.bf16.msra.mxu0 0
      %1833 = vmatprep.subr.bf16.mxu0 0
      %1834 = vmatpush1.bf16.msra.mxu0 0
      %1835 = vmatprep.subr.bf16.mxu0 0
      %1836 = vmatpush1.bf16.msra.mxu0 0
      %1837 = vmatprep.subr.bf16.mxu0 0
      %1838 = vmatpush1.bf16.msra.mxu0 0
      %1839 = vmatprep.subr.bf16.mxu0 0
      %1840 = vmatpush1.bf16.msra.mxu0 0
      %1841 = vmatprep.subr.bf16.mxu0 0
      %1842 = vmatpush1.bf16.msra.mxu0 0
      %1843 = vmatprep.subr.bf16.mxu0 0
      %1844 = vmatpush1.bf16.msra.mxu0 0
      %1845 = vmatprep.subr.bf16.mxu0 0
      %1846 = vmatpush1.bf16.msra.mxu0 0
      %1847 = vmatprep.subr.bf16.mxu0 0
      %1848 = vmatpush1.bf16.msra.mxu0 0
      %1849 = vmatprep.subr.bf16.mxu0 0
      %1850 = vmatpush1.bf16.msra.mxu0 0
      %1851 = vmatprep.mubr.bf16.mxu0 0
      %1852 = vmatmul.mubr.bf16.gmra.mrb[0].mxu0 %v1808
      %v1853 = vpop.f32.mrb[0].mxu0
      %v1854 = vadd.f32 0.0, %v1853
      %v1855 = vpop.f32.mrb[0].mxu0
      %v1856 = vadd.f32 0.0, %v1855
      %v1857 = vpop.f32.mrb[0].mxu0
      %v1858 = vadd.f32 0.0, %v1857
      %v1859 = vpop.f32.mrb[0].mxu0
      %v1860 = vadd.f32 0.0, %v1859
      %1861 = vmatprep.mubr.bf16.mxu0 0
      %1862 = vmatmul.mubr.bf16.gmra.mrb[0].mxu0 %v1811
      %v1863 = vpop.f32.mrb[0].mxu0
      %v1864 = vadd.f32 0.0, %v1863
      %v1865 = vpop.f32.mrb[0].mxu0
      %v1866 = vadd.f32 0.0, %v1865
      %v1867 = vpop.f32.mrb[0].mxu0
      %v1868 = vadd.f32 0.0, %v1867
      %v1869 = vpop.f32.mrb[0].mxu0
      %v1870 = vadd.f32 0.0, %v1869
      %1871 = vmatprep.mubr.bf16.mxu0 0
      %1872 = vmatmul.mubr.bf16.gmra.mrb[0].mxu0 %v1814
      %v1873 = vpop.f32.mrb[0].mxu0
      %v1874 = vadd.f32 0.0, %v1873
      %v1875 = vpop.f32.mrb[0].mxu0
      %v1876 = vadd.f32 0.0, %v1875
      %v1877 = vpop.f32.mrb[0].mxu0
      %v1878 = vadd.f32 0.0, %v1877
      %v1879 = vpop.f32.mrb[0].mxu0
      %v1880 = vadd.f32 0.0, %v1879
      %1881 = vmatprep.mubr.bf16.mxu0 0
      %1882 = vmatmul.mubr.bf16.gmra.mrb[0].mxu0 %v1817
      %v1883 = vpop.f32.mrb[0].mxu0
      %v1884 = vadd.f32 0.0, %v1883
      %v1885 = vpop.f32.mrb[0].mxu0
      %v1886 = vadd.f32 0.0, %v1885
      %v1887 = vpop.f32.mrb[0].mxu0
      %v1888 = vadd.f32 0.0, %v1887
      %v1889 = vpop.f32.mrb[0].mxu0
      %v1890 = vadd.f32 0.0, %v1889
      %1891 = vdwg.mxu0
      %1892 = vmatprep.subr.bf16.mxu0 0
      %1893 = vmatpush1.bf16.msra.mxu0 %v1783
      %1894 = vmatprep.subr.bf16.mxu0 0
      %1895 = vmatpush1.bf16.msra.mxu0 %v1786
      %1896 = vmatprep.subr.bf16.mxu0 0
      %1897 = vmatpush1.bf16.msra.mxu0 0
      %1898 = vmatprep.subr.bf16.mxu0 0
      %1899 = vmatpush1.bf16.msra.mxu0 0
      %1900 = vmatprep.subr.bf16.mxu0 0
      %1901 = vmatpush1.bf16.msra.mxu0 0
      %1902 = vmatprep.subr.bf16.mxu0 0
      %1903 = vmatpush1.bf16.msra.mxu0 0
      %1904 = vmatprep.subr.bf16.mxu0 0
      %1905 = vmatpush1.bf16.msra.mxu0 0
      %1906 = vmatprep.subr.bf16.mxu0 0
      %1907 = vmatpush1.bf16.msra.mxu0 0
      %1908 = vmatprep.subr.bf16.mxu0 0
      %1909 = vmatpush1.bf16.msra.mxu0 0
      %1910 = vmatprep.subr.bf16.mxu0 0
      %1911 = vmatpush1.bf16.msra.mxu0 0
      %1912 = vmatprep.subr.bf16.mxu0 0
      %1913 = vmatpush1.bf16.msra.mxu0 0
      %1914 = vmatprep.subr.bf16.mxu0 0
      %1915 = vmatpush1.bf16.msra.mxu0 0
      %1916 = vmatprep.subr.bf16.mxu0 0
      %1917 = vmatpush1.bf16.msra.mxu0 0
      %1918 = vmatprep.subr.bf16.mxu0 0
      %1919 = vmatpush1.bf16.msra.mxu0 0
      %1920 = vmatprep.subr.bf16.mxu0 0
      %1921 = vmatpush1.bf16.msra.mxu0 0
      %1922 = vmatprep.subr.bf16.mxu0 0
      %1923 = vmatpush1.bf16.msra.mxu0 0
      %1924 = vmatprep.mubr.bf16.mxu0 0
      %1925 = vmatmul.mubr.bf16.gmra.mrb[0].mxu0 %v1808
      %v1926 = vpop.f32.mrb[0].mxu0
      %v1927 = vadd.f32 0.0, %v1926
      %v1928 = vpop.f32.mrb[0].mxu0
      %v1929 = vpop.f32.mrb[0].mxu0
      %v1930 = vadd.f32 0.0, %v1929
      %v1931 = vpop.f32.mrb[0].mxu0
      %1932 = vmatprep.mubr.bf16.mxu0 0
      %1933 = vmatmul.mubr.bf16.gmra.mrb[0].mxu0 %v1811
      %v1934 = vpop.f32.mrb[0].mxu0
      %v1935 = vadd.f32 0.0, %v1934
      %v1936 = vpop.f32.mrb[0].mxu0
      %v1937 = vpop.f32.mrb[0].mxu0
      %v1938 = vadd.f32 0.0, %v1937
      %v1939 = vpop.f32.mrb[0].mxu0
      %1940 = vmatprep.mubr.bf16.mxu0 0
      %1941 = vmatmul.mubr.bf16.gmra.mrb[0].mxu0 %v1814
      %v1942 = vpop.f32.mrb[0].mxu0
      %v1943 = vadd.f32 0.0, %v1942
      %v1944 = vpop.f32.mrb[0].mxu0
      %v1945 = vpop.f32.mrb[0].mxu0
      %v1946 = vadd.f32 0.0, %v1945
      %v1947 = vpop.f32.mrb[0].mxu0
      %1948 = vmatprep.mubr.bf16.mxu0 0
      %1949 = vmatmul.mubr.bf16.gmra.mrb[0].mxu0 %v1817
      %v1950 = vpop.f32.mrb[0].mxu0
      %v1951 = vadd.f32 0.0, %v1950
      %v1952 = vpop.f32.mrb[0].mxu0
      %v1953 = vpop.f32.mrb[0].mxu0
      %v1954 = vadd.f32 0.0, %v1953
      %v1955 = vpop.f32.mrb[0].mxu0
      %1956 = vdwg.mxu0
      %v1957 = vmax.f32 %v1854, 0.0
      %v1958 = vmax.f32 %v1856, 0.0
      %v1959 = vmax.f32 %v1927, 0.0
      %v1960 = vmax.f32 %v1858, 0.0
      %v1961 = vmax.f32 %v1860, 0.0
      %v1962 = vmax.f32 %v1930, 0.0
      %v1963 = vmax.f32 %v1864, 0.0
      %v1964 = vmax.f32 %v1866, 0.0
      %v1965 = vmax.f32 %v1935, 0.0
      %v1966 = vmax.f32 %v1868, 0.0
      %v1967 = vmax.f32 %v1870, 0.0
      %v1968 = vmax.f32 %v1938, 0.0
      %v1969 = vmax.f32 %v1874, 0.0
      %v1970 = vmax.f32 %v1876, 0.0
      %v1971 = vmax.f32 %v1943, 0.0
      %v1972 = vmax.f32 %v1878, 0.0
      %v1973 = vmax.f32 %v1880, 0.0
      %v1974 = vmax.f32 %v1946, 0.0
      %v1975 = vmax.f32 %v1884, 0.0
      %v1976 = vmax.f32 %v1886, 0.0
      %v1977 = vmax.f32 %v1951, 0.0
      %v1978 = vmax.f32 %v1888, 0.0
      %v1979 = vmax.f32 %v1890, 0.0
      %v1980 = vmax.f32 %v1954, 0.0
      %v1981 = vld [vmem:[%s690] sm:$0xff]
      %v1982 = vld [vmem:[%s690 + $0x8] sm:$0xff]
      %v1983 = vld [vmem:[%s690 + $0x10] sm:$0xff]
      %v1984 = vld [vmem:[%s690 + $0x18] sm:$0xff]
      %v1985 = vld [vmem:[%s690 + $0x20] sm:$0xff]
      %v1986 = vld [vmem:[%s690 + $0x28] sm:$0xff]
      %v1987 = vld [vmem:[%s690 + $0x30] sm:$0xff]
      %v1988 = vld [vmem:[%s690 + $0x38] sm:$0xff]
      %v1989 = vld [vmem:[%s757] sm:$0xf]
      %v1990 = vld [vmem:[%s757 + $0x4] sm:$0xf]
      %v1991 = vmul.f32 %v1957, %v1981
      %v1992 = vmul.f32 %v1960, %v1982
      %v1993 = vmul.f32 %v1963, %v1983
      %v1994 = vmul.f32 %v1966, %v1984
      %v1995 = vmul.f32 %v1969, %v1985
      %v1996 = vmul.f32 %v1972, %v1986
      %v1997 = vmul.f32 %v1975, %v1987
      %v1998 = vmul.f32 %v1978, %v1988
      %v1999 = vpack.c.bf16 %v1992, %v1991
      %v2000 = vpack.c.bf16 %v1994, %v1993
      %v2001 = vpack.c.bf16 %v1996, %v1995
      %v2002 = vpack.c.bf16 %v1998, %v1997
      %v2005 = vunpack.c.l.b16 %v1989
      %v2006 = vunpack.c.l.b16 %v1990
      %v2007 = vpack.c.b16 %v2006, %v2005
      %vm2008 = vcmask 523264
      %v2010 = vsel %vm2008, %v2007, 0
      %2012 = vmatprep.subr.bf16.mxu0 0
      %2013 = vmatpush1.bf16.msra.mxu0 %v1999
      %2014 = vmatprep.subr.bf16.mxu0 0
      %2015 = vmatpush1.bf16.msra.mxu0 %v2000
      %2016 = vmatprep.subr.bf16.mxu0 0
      %2017 = vmatpush1.bf16.msra.mxu0 %v2001
      %2018 = vmatprep.subr.bf16.mxu0 0
      %2019 = vmatpush1.bf16.msra.mxu0 %v2002
      %2020 = vmatprep.subr.bf16.mxu0 0
      %2021 = vmatpush1.bf16.msra.mxu0 0
      %2022 = vmatprep.subr.bf16.mxu0 0
      %2023 = vmatpush1.bf16.msra.mxu0 0
      %2024 = vmatprep.subr.bf16.mxu0 0
      %2025 = vmatpush1.bf16.msra.mxu0 0
      %2026 = vmatprep.subr.bf16.mxu0 0
      %2027 = vmatpush1.bf16.msra.mxu0 0
      %2028 = vmatprep.subr.bf16.mxu0 0
      %2029 = vmatpush1.bf16.msra.mxu0 0
      %2030 = vmatprep.subr.bf16.mxu0 0
      %2031 = vmatpush1.bf16.msra.mxu0 0
      %2032 = vmatprep.subr.bf16.mxu0 0
      %2033 = vmatpush1.bf16.msra.mxu0 0
      %2034 = vmatprep.subr.bf16.mxu0 0
      %2035 = vmatpush1.bf16.msra.mxu0 0
      %2036 = vmatprep.subr.bf16.mxu0 0
      %2037 = vmatpush1.bf16.msra.mxu0 0
      %2038 = vmatprep.subr.bf16.mxu0 0
      %2039 = vmatpush1.bf16.msra.mxu0 0
      %2040 = vmatprep.subr.bf16.mxu0 0
      %2041 = vmatpush1.bf16.msra.mxu0 0
      %2042 = vmatprep.subr.bf16.mxu0 0
      %2043 = vmatpush1.bf16.msra.mxu0 0
      %2044 = vmatprep.mubr.bf16.mxu0 0
      %2045 = vmatmul.mubr.bf16.gmra.mrb[0].mxu0 %v2010
      %v2046 = vpop.f32.mrb[0].mxu0
      %v2047 = vadd.f32 0.0, %v2046
      %v2048 = vpop.f32.mrb[0].mxu0
      %v2049 = vpop.f32.mrb[0].mxu0
      %v2050 = vadd.f32 0.0, %v2049
      %v2051 = vpop.f32.mrb[0].mxu0
      %2052 = vdwg.mxu0
      %2053 = vst [vmem:[%s766] sm:$0xff] %v2047
      %2054 = vst [vmem:[%s766 + $0x8] sm:$0xff] %v2050
      %v2055 = vmul.f32 %v1958, %v1981
      %v2056 = vmul.f32 %v1961, %v1982
      %v2057 = vmul.f32 %v1964, %v1983
      %v2058 = vmul.f32 %v1967, %v1984
      %v2059 = vmul.f32 %v1970, %v1985
      %v2060 = vmul.f32 %v1973, %v1986
      %v2061 = vmul.f32 %v1976, %v1987
      %v2062 = vmul.f32 %v1979, %v1988
      %v2063 = vpack.c.bf16 %v2056, %v2055
      %v2064 = vpack.c.bf16 %v2058, %v2057
      %v2065 = vpack.c.bf16 %v2060, %v2059
      %v2066 = vpack.c.bf16 %v2062, %v2061
      %2067 = vmatprep.subr.bf16.mxu0 0
      %2068 = vmatpush1.bf16.msra.mxu0 %v2063
      %2069 = vmatprep.subr.bf16.mxu0 0
      %2070 = vmatpush1.bf16.msra.mxu0 %v2064
      %2071 = vmatprep.subr.bf16.mxu0 0
      %2072 = vmatpush1.bf16.msra.mxu0 %v2065
      %2073 = vmatprep.subr.bf16.mxu0 0
      %2074 = vmatpush1.bf16.msra.mxu0 %v2066
      %2075 = vmatprep.subr.bf16.mxu0 0
      %2076 = vmatpush1.bf16.msra.mxu0 0
      %2077 = vmatprep.subr.bf16.mxu0 0
      %2078 = vmatpush1.bf16.msra.mxu0 0
      %2079 = vmatprep.subr.bf16.mxu0 0
      %2080 = vmatpush1.bf16.msra.mxu0 0
      %2081 = vmatprep.subr.bf16.mxu0 0
      %2082 = vmatpush1.bf16.msra.mxu0 0
      %2083 = vmatprep.subr.bf16.mxu0 0
      %2084 = vmatpush1.bf16.msra.mxu0 0
      %2085 = vmatprep.subr.bf16.mxu0 0
      %2086 = vmatpush1.bf16.msra.mxu0 0
      %2087 = vmatprep.subr.bf16.mxu0 0
      %2088 = vmatpush1.bf16.msra.mxu0 0
      %2089 = vmatprep.subr.bf16.mxu0 0
      %2090 = vmatpush1.bf16.msra.mxu0 0
      %2091 = vmatprep.subr.bf16.mxu0 0
      %2092 = vmatpush1.bf16.msra.mxu0 0
      %2093 = vmatprep.subr.bf16.mxu0 0
      %2094 = vmatpush1.bf16.msra.mxu0 0
      %2095 = vmatprep.subr.bf16.mxu0 0
      %2096 = vmatpush1.bf16.msra.mxu0 0
      %2097 = vmatprep.subr.bf16.mxu0 0
      %2098 = vmatpush1.bf16.msra.mxu0 0
      %2099 = vmatprep.mubr.bf16.mxu0 0
      %2100 = vmatmul.mubr.bf16.gmra.mrb[0].mxu0 %v2010
      %v2101 = vpop.f32.mrb[0].mxu0
      %v2102 = vadd.f32 0.0, %v2101
      %v2103 = vpop.f32.mrb[0].mxu0
      %v2104 = vpop.f32.mrb[0].mxu0
      %v2105 = vadd.f32 0.0, %v2104
      %v2106 = vpop.f32.mrb[0].mxu0
      %2107 = vdwg.mxu0
      %s2108 = scalar_lea.vmem %s766, 16
      %2109 = vst [vmem:[%s2108] sm:$0xff] %v2102
      %2110 = vst [vmem:[%s2108 + $0x8] sm:$0xff] %v2105
      %v2111 = vmul.f32 %v1959, %v1981
      %v2112 = vmul.f32 %v1962, %v1982
      %v2113 = vmul.f32 %v1965, %v1983
      %v2114 = vmul.f32 %v1968, %v1984
      %v2115 = vmul.f32 %v1971, %v1985
      %v2116 = vmul.f32 %v1974, %v1986
      %v2117 = vmul.f32 %v1977, %v1987
      %v2118 = vmul.f32 %v1980, %v1988
      %v2119 = vpack.c.bf16 %v2112, %v2111
      %v2120 = vpack.c.bf16 %v2114, %v2113
      %v2121 = vpack.c.bf16 %v2116, %v2115
      %v2122 = vpack.c.bf16 %v2118, %v2117
      %2123 = vmatprep.subr.bf16.mxu0 0
      %2124 = vmatpush1.bf16.msra.mxu0 %v2119
      %2125 = vmatprep.subr.bf16.mxu0 0
      %2126 = vmatpush1.bf16.msra.mxu0 %v2120
      %2127 = vmatprep.subr.bf16.mxu0 0
      %2128 = vmatpush1.bf16.msra.mxu0 %v2121
      %2129 = vmatprep.subr.bf16.mxu0 0
      %2130 = vmatpush1.bf16.msra.mxu0 %v2122
      %2131 = vmatprep.subr.bf16.mxu0 0
      %2132 = vmatpush1.bf16.msra.mxu0 0
      %2133 = vmatprep.subr.bf16.mxu0 0
      %2134 = vmatpush1.bf16.msra.mxu0 0
      %2135 = vmatprep.subr.bf16.mxu0 0
      %2136 = vmatpush1.bf16.msra.mxu0 0
      %2137 = vmatprep.subr.bf16.mxu0 0
      %2138 = vmatpush1.bf16.msra.mxu0 0
      %2139 = vmatprep.subr.bf16.mxu0 0
      %2140 = vmatpush1.bf16.msra.mxu0 0
      %2141 = vmatprep.subr.bf16.mxu0 0
      %2142 = vmatpush1.bf16.msra.mxu0 0
      %2143 = vmatprep.subr.bf16.mxu0 0
      %2144 = vmatpush1.bf16.msra.mxu0 0
      %2145 = vmatprep.subr.bf16.mxu0 0
      %2146 = vmatpush1.bf16.msra.mxu0 0
      %2147 = vmatprep.subr.bf16.mxu0 0
      %2148 = vmatpush1.bf16.msra.mxu0 0
      %2149 = vmatprep.subr.bf16.mxu0 0
      %2150 = vmatpush1.bf16.msra.mxu0 0
      %2151 = vmatprep.subr.bf16.mxu0 0
      %2152 = vmatpush1.bf16.msra.mxu0 0
      %2153 = vmatprep.subr.bf16.mxu0 0
      %2154 = vmatpush1.bf16.msra.mxu0 0
      %2155 = vmatprep.mubr.bf16.mxu0 0
      %2156 = vmatmul.mubr.bf16.gmra.mrb[0].mxu0 %v2010
      %v2157 = vpop.f32.mrb[0].mxu0
      %v2158 = vadd.f32 0.0, %v2157
      %v2159 = vpop.f32.mrb[0].mxu0
      %v2160 = vpop.f32.mrb[0].mxu0
      %v2161 = vadd.f32 0.0, %v2160
      %v2162 = vpop.f32.mrb[0].mxu0
      %2163 = vdwg.mxu0
      %s2164 = scalar_lea.vmem %s766, 32
      %2165 = vst [vmem:[%s2164] sm:$0xff] %v2158
      %2166 = vst [vmem:[%s2164 + $0x8] sm:$0xff] %v2161
      %p2167 = scmp.lt.s32.totalorder %s35, 1
      %s2168 = scalar_select %p2167, %s35, 1
      %p2169 = scmp.lt.s32.totalorder %s36, 0
      %s2170 = scalar_select %p2169, %s36, 0
      %s2171 = smul.addr %s2168, 6
      %s2172 = sadd.s32 %s2170, %s2171
      %s2173 = smul.addr %s2172, 8
      %s2174 = scalar_lea.vmem %s14, %s2173
      // Predicated region
      $region73: #{decoder_select_forward.1} parent=71 // pred_check
        %p2175 = pneg %p421
      $region74: #{decoder_select_forward.1} parent=71 // pred_check_branch
        %2177 = sbr.rel (%p2175) target = $region76
      $region75: #{decoder_select_forward.1} parent=71 // pred_region
        _
      $region76: #{decoder_select_forward.1} parent=71 // pred_fallthru
        _
    $region72: #{decoder_select_forward.1} parent=5 // pred_fallthru
      _
    %p2178 = scmp.le.s32.totalorder 2, %s26
    // Predicated region
    $region77: #{decoder_select_forward.1} parent=5 // pred_check
      %p2179 = pneg %p2178
    $region78: #{decoder_select_forward.1} parent=5 // pred_check_branch
      %2181 = sbr.rel (%p2179) target = $region80
    $region79: #{decoder_select_forward.1} parent=5 // pred_region
      %s2182 = ssub.s32 %s26, 2
      // Predicated region
      $region81: #{decoder_select_forward.1} parent=79 // pred_check
        %p2183 = pneg %p427
      $region82: #{decoder_select_forward.1} parent=79 // pred_check_branch
        %2185 = sbr.rel (%p2183) target = $region84
      $region83: #{decoder_select_forward.1} parent=79 // pred_region
        %p2186 = scmp.lt.s32.totalorder %s37, 1
        %s2187 = scalar_select %p2186, %s37, 1
        %p2188 = scmp.lt.s32.totalorder %s38, 0
        %s2189 = scalar_select %p2188, %s38, 0
        %s2190 = smul.addr %s2187, 6
        %s2191 = sadd.s32 %s2189, %s2190
        %s2192 = smul.addr %s2191, 8
        %s2193 = scalar_lea.vmem %s14, %s2192
      $region84: #{decoder_select_forward.1} parent=79 // pred_fallthru
        _
    $region80: #{decoder_select_forward.1} parent=5 // pred_fallthru
      _
  $region6: #{decoder_select_forward.1} parent=0 // loop_footer
    %s30 = sadd.s32 1, %s26
  $region7: #{decoder_select_forward.1} parent=0 // loop_footer_branch
    %25 = sbr.rel target = $region3
  $region8: #{decoder_select_forward.1} parent=0 // loop_exit
    _

</llo_original>
